<compile_context>
chip_gen: v6e
topology: v6e:2x2x1
jax: 0.10.0
libtpu: 0.0.40
codegen_flags: <defaults>
</compile_context>

<pallas_src>
import functools

import jax
import jax.numpy as jnp
import numpy as np
from jax import lax
from jax.experimental import pallas as pl
from jax.experimental.pallas import tpu as pltpu


def _round_up(x: int, m: int) -> int:
    return ((x + m - 1) // m) * m


# ----------------------------------------------------------------------------
# Glue: sinusoidal positional encoding (add_pos_enc) and reference mask.
# ----------------------------------------------------------------------------
def positional_encoding(max_len: int, d_model: int) -> jnp.ndarray:
    pos = jnp.arange(max_len, dtype=jnp.float32)[:, None]           # (M, 1)
    i = jnp.arange(d_model // 2, dtype=jnp.float32)                  # (d/2,)
    denom = jnp.power(10000.0, 2.0 * i / d_model)                    # (d/2,)
    angles = pos / denom                                             # (M, d/2)
    pe = jnp.zeros((max_len, d_model), dtype=jnp.float32)
    pe = pe.at[:, 0::2].set(jnp.sin(angles))
    pe = pe.at[:, 1::2].set(jnp.cos(angles))
    return pe


def build_truncated_mask(mask: jnp.ndarray, left: int, right: int) -> jnp.ndarray:
    """truncate_attention_mask: (b, q, k) is True iff k in [q-left, q+right]
    and key position k is valid (reference-side only)."""
    B, M = mask.shape
    q_idx = jnp.arange(M)[:, None]
    k_idx = jnp.arange(M)[None, :]
    window = (k_idx >= q_idx - left) & (k_idx <= q_idx + right)
    return window[None, :, :] & mask[:, None, :]


# ----------------------------------------------------------------------------
# Pallas kernel: split QKV projection + truncated masked MHSA on a query tile
# ----------------------------------------------------------------------------
def _mhsa_kernel(*refs, h, dk, d, tq, wk, l_pad, left, right, neg, masked,
                 lane_aligned, cdt):
    if masked:
        lens_ref = refs[0]          # scalar-prefetched int32 lengths in SMEM
        refs = refs[1:]
    x_ref, wq_ref, bq_ref, wkv_ref, bkv_ref, o_ref, q_scr, kv_scr = refs[:8]
    out_scr = None if lane_aligned else refs[8]

    M = x_ref.shape[1]
    b = pl.program_id(0)
    qi = pl.program_id(1)
    q0 = qi * tq                                   # first query row of this block
    # Key-window start; a multiple of 8 by construction (tq, l_pad, wk, M % 8 == 0).
    kstart = jnp.clip(q0 - l_pad, 0, M - wk)
    kstart = pl.multiple_of(kstart, 8)
    q0a = pl.multiple_of(q0, 8)

    # Split projection (review item): q over the tq query rows only; k/v over the
    # wk-row key window.  wq/bq were pre-scaled by 1/d_model host-side.  Operands
    # are cast to the compute dtype (bf16 on v6e/v7x) with f32 accumulation.
    x_q = x_ref[0, pl.ds(q0a, tq), :]                                  # (tq, d)
    x_win = x_ref[0, pl.ds(kstart, wk), :]                             # (wk, d)
    q_scr[...] = (jnp.dot(x_q.astype(cdt), wq_ref[...],
                          preferred_element_type=jnp.float32)
                  + bq_ref[...]).astype(cdt)                           # (tq, d)
    kv_scr[...] = (jnp.dot(x_win.astype(cdt), wkv_ref[...],
                           preferred_element_type=jnp.float32)
                   + bkv_ref[...]).astype(cdt)                         # (wk, 2d)

    if masked:
        # Truncation band + key-padding validity from iotas and the per-batch
        # length: a single fused VPU compare, no mask DMA stream, no logit-bias
        # matmul.  NOTE: a query row whose whole window is invalid (only possible
        # for padded queries) degenerates to a uniform average over the window,
        # whereas the reference averages over all M positions; padded rows are
        # garbage either way.
        seq_len = lens_ref[b]
        rows = lax.broadcasted_iota(jnp.int32, (tq, wk), 0) + q0       # query idx
        cols = lax.broadcasted_iota(jnp.int32, (tq, wk), 1) + kstart   # key idx
        valid = ((cols >= rows - left) & (cols <= rows + right)
                 & (cols < seq_len))

    for hi in range(h):
        lo = hi * dk
        qh = q_scr[:, lo:lo + dk]                       # (tq, dk), already * 1/d
        kh = kv_scr[:, lo:lo + dk]                      # (wk, dk)
        vh = kv_scr[:, d + lo:d + lo + dk]              # (wk, dk)

        s = lax.dot_general(qh, kh, (((1,), (1,)), ((), ())),
                            preferred_element_type=jnp.float32)        # (tq, wk)
        if masked:
            s = jnp.where(valid, s, neg)                # == masking_value / d

        s = s - jnp.max(s, axis=-1, keepdims=True)
        p = jnp.exp(s)
        inv_l = pl.reciprocal(jnp.sum(p, axis=-1, keepdims=True), approx=True)
        oh = jnp.dot(p.astype(cdt), vh,
                     preferred_element_type=jnp.float32) * inv_l       # (tq, dk)

        if lane_aligned:
            # dk is a multiple of 128: lane-aligned direct store, no staging.
            o_ref[0, :, lo:lo + dk] = oh.astype(o_ref.dtype)
        else:
            # dk < 128: stage per-head results, then one lane-dense store.
            out_scr[:, lo:lo + dk] = oh

    if not lane_aligned:
        o_ref[0] = out_scr[...].astype(o_ref.dtype)


def truncated_relative_mhsa(x, mask, params, *, h, left_size, right_size,
                            masking_value=-1e15, q_block=256,
                            compute_dtype=jnp.float32):
    """x: [B, M, d] float32; mask: [B, M] bool (prefix/length padding mask) or None."""
    B, M, d = x.shape
    assert d % h == 0
    dk = d // h

    # add_pos_enc (glue)
    x = x + positional_encoding(M, d)[None]

    tq = min(q_block, M)
    assert tq % 8 == 0 and M % tq == 0, (
        "sequence length must be a multiple of the (8-aligned) query tile")
    # TODO(synk): pad ragged M (and extend the key validity) instead of asserting.

    masked = mask is not None
    if masked:
        l_pad = _round_up(max(left_size, 0), 8)
        wk = min(M, _round_up(tq + l_pad + max(right_size, 0), 8))
        # Scalar-prefetched lengths replace the [B, M] mask DMA stream.
        # TODO(synk): non-contiguous (non prefix-length) key masks would need the
        # full mask streamed (or packed into an SMEM bitmask) instead of lengths.
        lens = jnp.sum(mask.astype(jnp.int32), axis=-1)                 # (B,)
    else:
        # mask=None => plain (untruncated, unmasked) self attention, and the
        # variant pallas_call below carries no mask/length operand at all.
        l_pad = 0
        wk = M

    cdt = jnp.dtype(compute_dtype)
    inv_d = 1.0 / float(d)
    # Fold the 1/d_model softmax scale into the query weights/bias (one-time
    # host-side transform); fuse K and V projections into one (d, 2d) matmul.
    wq = (params["wq"] * inv_d).astype(cdt)                             # (d, d)
    wkv = jnp.concatenate([params["wk"], params["wv"]], axis=1).astype(cdt)
    bq = (params["bq"] * inv_d).reshape(1, d).astype(jnp.float32)
    bkv = jnp.concatenate([params["bk"], params["bv"]],
                          axis=0).reshape(1, 2 * d).astype(jnp.float32)

    lane_aligned = (dk % 128 == 0)

    kernel = functools.partial(
        _mhsa_kernel, h=h, dk=dk, d=d, tq=tq, wk=wk, l_pad=l_pad,
        left=left_size, right=right_size, neg=float(masking_value) * inv_d,
        masked=masked, lane_aligned=lane_aligned, cdt=cdt)

    # index_maps receive the scalar-prefetch ref as a trailing positional arg.
    if masked:
        x_map = lambda b, q, lens: (b, 0, 0)
        c_map = lambda b, q, lens: (0, 0)
        o_map = lambda b, q, lens: (b, q, 0)
    else:
        x_map = lambda b, q: (b, 0, 0)
        c_map = lambda b, q: (0, 0)
        o_map = lambda b, q: (b, q, 0)

    single = pl.Buffered(1)   # constant-index operands: drop the 2nd VMEM buffer
    in_specs = [
        pl.BlockSpec((1, M, d), x_map),   # x resident per batch (see v7x TODO above)
        pl.BlockSpec((d, d), c_map, pipeline_mode=single),        # wq (pre-scaled)
        pl.BlockSpec((1, d), c_map, pipeline_mode=single),        # bq (pre-scaled)
        pl.BlockSpec((d, 2 * d), c_map, pipeline_mode=single),    # fused wk|wv
        pl.BlockSpec((1, 2 * d), c_map, pipeline_mode=single),    # fused bk|bv
    ]

    scratch = [pltpu.VMEM((tq, d), cdt),          # projected queries
               pltpu.VMEM((wk, 2 * d), cdt)]      # projected keys|values (window)
    if not lane_aligned:
        scratch.append(pltpu.VMEM((tq, d), jnp.float32))   # output staging

    # Explicit VMEM budget (the x block dominates); generous slack to stay safe.
    cds = cdt.itemsize
    vmem_est = (2 * M * d * 4                       # x, double-buffered
                + 3 * d * d * cds + 3 * d * 4       # weights + biases (single buf)
                + 2 * tq * d * 4                    # output, double-buffered
                + (tq * d + wk * 2 * d) * cds       # projection scratch
                + tq * d * 4)                       # staging scratch
    vmem_limit = int(min(max(4 * vmem_est, 32 << 20), 128 << 20))

    # Prefer megacore sharding on the batch axis when B >= 2, so the two v7x
    # TensorCores stream disjoint batches instead of the same (1, M, d) x block.
    dims = ("parallel", "arbitrary") if B > 1 else ("arbitrary", "parallel")

    grid_spec = pltpu.PrefetchScalarGridSpec(
        num_scalar_prefetch=1 if masked else 0,
        grid=(B, M // tq),
        in_specs=in_specs,
        out_specs=pl.BlockSpec((1, tq, d), o_map),
        scratch_shapes=scratch,
    )

    call = pl.pallas_call(
        kernel,
        out_shape=jax.ShapeDtypeStruct((B, M, d), jnp.float32),
        grid_spec=grid_spec,
        compiler_params=pltpu.CompilerParams(
            dimension_semantics=dims, vmem_limit_bytes=vmem_limit),
    )
    if masked:
        return call(lens, x, wq, bq, wkv, bkv)
    return call(x, wq, bq, wkv, bkv)


# ----------------------------------------------------------------------------
# Pure-JAX reference mirroring the PyTorch module (for verification)
# ----------------------------------------------------------------------------
def reference(x, mask, params, *, h, left_size, right_size, masking_value=-1e15):
    B, M, d = x.shape
    dk = d // h
    x = x + positional_encoding(M, d)[None]
    q = x @ params["wq"] + params["bq"]
    k = x @ params["wk"] + params["bk"]
    v = x @ params["wv"] + params["bv"]
    qh = q.reshape(B, M, h, dk).transpose(0, 2, 1, 3)                # (B,h,M,dk)
    kh = k.reshape(B, M, h, dk).transpose(0, 2, 3, 1)                # (B,h,dk,M)
    vh = v.reshape(B, M, h, dk).transpose(0, 2, 1, 3)                # (B,h,M,dk)
    att = jnp.matmul(qh, kh)                                         # (B,h,M,M)
    if mask is not None:
        tm = build_truncated_mask(mask, left_size, right_size)       # (B,M,M)
        att = jnp.where(tm[:, None], att, masking_value)
    att = jax.nn.softmax(att / d, axis=-1)
    out = jnp.matmul(att, vh)                                        # (B,h,M,dk)
    return out.transpose(0, 2, 1, 3).reshape(B, M, d)


def _make_params(key, d):
    kq, kk, kv, kbq, kbk, kbv = jax.random.split(key, 6)
    bound = 1.0 / np.sqrt(d)
    return {
        "wq": jax.random.uniform(kq, (d, d), jnp.float32, -bound, bound),
        "wk": jax.random.uniform(kk, (d, d), jnp.float32, -bound, bound),
        "wv": jax.random.uniform(kv, (d, d), jnp.float32, -bound, bound),
        "bq": jax.random.uniform(kbq, (d,), jnp.float32, -bound, bound),
        "bk": jax.random.uniform(kbk, (d,), jnp.float32, -bound, bound),
        "bv": jax.random.uniform(kbv, (d,), jnp.float32, -bound, bound),
    }


# ----------------------------------------------------------------------------
# Main
# ----------------------------------------------------------------------------
if __name__ == "__main__":
    B, M, D, H = 2, 32, 32, 4
    LEFT, RIGHT = 4, 2

    key = jax.random.PRNGKey(0)
    kx, kp, kx2, kp2 = jax.random.split(key, 4)

    x = jax.random.normal(kx, (B, M, D), dtype=jnp.float32)
    params = _make_params(kp, D)

    # Padding mask: first sequence fully valid, second has 2 padded positions.
    lengths = jnp.array([M, M - 2])
    mask = jnp.arange(M)[None, :] < lengths[:, None]                 # (B, M) bool

    # 1) masked path, f32 compute, q_block=8 exercises the query-tiling +
    #    windowed-key path (wk=24 < M, dynamic key-window start + clipping).
    out = truncated_relative_mhsa(x, mask, params, h=H,
                                  left_size=LEFT, right_size=RIGHT, q_block=8)
    out = jax.block_until_ready(out)
    ref = reference(x, mask, params, h=H, left_size=LEFT, right_size=RIGHT)
    np.testing.assert_allclose(np.asarray(out), np.asarray(ref),
                               rtol=2e-3, atol=2e-3)

    # 2) mask=None path (plain, untruncated MHSA; no mask/length operand) with
    #    bf16 MXU operands (the v6e/v7x perf configuration) -> looser tolerance.
    out_nm = truncated_relative_mhsa(x, None, params, h=H,
                                     left_size=LEFT, right_size=RIGHT,
                                     q_block=8, compute_dtype=jnp.bfloat16)
    out_nm = jax.block_until_ready(out_nm)
    ref_nm = reference(x, None, params, h=H, left_size=LEFT, right_size=RIGHT)
    np.testing.assert_allclose(np.asarray(out_nm), np.asarray(ref_nm),
                               rtol=2e-2, atol=2e-2)

    # 3) dk == 128 exercises the lane-aligned per-head direct-store path.
    D2, H2 = 256, 2
    x2 = jax.random.normal(kx2, (B, M, D2), dtype=jnp.float32)
    params2 = _make_params(kp2, D2)
    out2 = truncated_relative_mhsa(x2, mask, params2, h=H2,
                                   left_size=LEFT, right_size=RIGHT, q_block=8)
    out2 = jax.block_until_ready(out2)
    ref2 = reference(x2, mask, params2, h=H2, left_size=LEFT, right_size=RIGHT)
    np.testing.assert_allclose(np.asarray(out2), np.asarray(ref2),
                               rtol=2e-3, atol=2e-3)

    print("KERNEL_OK")
</pallas_src>

<mosaic_0001>
module attributes {stable_mosaic.version = 11 : i64} {
  func.func @_mhsa_kernel(%arg0: i32, %arg1: i32, %arg2: memref<2xi32, #tpu.memory_space<smem>>, %arg3: memref<1x32x32xf32, #tpu.memory_space<vmem>>, %arg4: memref<32x32xf32, #tpu.memory_space<vmem>>, %arg5: memref<1x32xf32, #tpu.memory_space<vmem>>, %arg6: memref<32x64xf32, #tpu.memory_space<vmem>>, %arg7: memref<1x64xf32, #tpu.memory_space<vmem>>, %arg8: memref<1x8x32xf32, #tpu.memory_space<vmem>>, %arg9: memref<8x32xf32, #tpu.memory_space<vmem>>, %arg10: memref<24x64xf32, #tpu.memory_space<vmem>>, %arg11: memref<8x32xf32, #tpu.memory_space<vmem>>) attributes {dimension_semantics = [#tpu.dimension_semantics<parallel>, #tpu.dimension_semantics<arbitrary>], iteration_bounds = array<i64: 2, 4>, scalar_prefetch = 1 : i64, scratch_operands = 3 : i64, tpu.core_type = #tpu.core_type<tc>, window_params = [{transform_indices = @transform_0, window_bounds = array<i64: 1, 32, 32>}, {pipeline_mode = #tpu.pipeline_mode<synchronous>, transform_indices = @transform_1, window_bounds = array<i64: 32, 32>}, {pipeline_mode = #tpu.pipeline_mode<synchronous>, transform_indices = @transform_2, window_bounds = array<i64: 1, 32>}, {pipeline_mode = #tpu.pipeline_mode<synchronous>, transform_indices = @transform_3, window_bounds = array<i64: 32, 64>}, {pipeline_mode = #tpu.pipeline_mode<synchronous>, transform_indices = @transform_4, window_bounds = array<i64: 1, 64>}, {transform_indices = @transform_5, window_bounds = array<i64: 1, 8, 32>}]} {
    %c8_i32 = arith.constant 8 : i32
    %0 = arith.muli %arg1, %c8_i32 : i32
    %c8_i32_0 = arith.constant 8 : i32
    %1 = arith.subi %0, %c8_i32_0 : i32
    %c0_i32 = arith.constant 0 : i32
    %c8_i32_1 = arith.constant 8 : i32
    %2 = arith.maxsi %c0_i32, %1 : i32
    %3 = arith.minsi %c8_i32_1, %2 : i32
    %4 = tpu.assume_multiple %3, 8 : i32
    %5 = tpu.assume_multiple %0, 8 : i32
    %c0 = arith.constant 0 : index
    %6 = arith.index_cast %5 : i32 to index
    %c0_2 = arith.constant 0 : index
    %7 = vector.load %arg3[%c0, %6, %c0_2] : memref<1x32x32xf32, #tpu.memory_space<vmem>>, vector<1x8x32xf32>
    %8 = vector.shape_cast %7 : vector<1x8x32xf32> to vector<8x32xf32>
    %c0_3 = arith.constant 0 : index
    %9 = arith.index_cast %4 : i32 to index
    %c0_4 = arith.constant 0 : index
    %10 = vector.load %arg3[%c0_3, %9, %c0_4] : memref<1x32x32xf32, #tpu.memory_space<vmem>>, vector<1x24x32xf32>
    %11 = vector.shape_cast %10 : vector<1x24x32xf32> to vector<24x32xf32>
    %c0_5 = arith.constant 0 : index
    %c0_6 = arith.constant 0 : index
    %12 = vector.load %arg4[%c0_5, %c0_6] : memref<32x32xf32, #tpu.memory_space<vmem>>, vector<32x32xf32>
    %cst = arith.constant dense<0.000000e+00> : vector<8x32xf32>
    %13 = tpu.matmul %8, %12, %cst {dimension_numbers = #tpu.dot_dimension_numbers<[1], [0], [0], [1], [0, 0, 1, 1], [], []>} : vector<8x32xf32>, vector<32x32xf32>, vector<8x32xf32> -> vector<8x32xf32>
    %c0_7 = arith.constant 0 : index
    %c0_8 = arith.constant 0 : index
    %14 = vector.load %arg5[%c0_7, %c0_8] : memref<1x32xf32, #tpu.memory_space<vmem>>, vector<1x32xf32>
    %15 = vector.broadcast %14 : vector<1x32xf32> to vector<8x32xf32>
    %16 = arith.addf %13, %15 : vector<8x32xf32>
    %c0_9 = arith.constant 0 : index
    %c0_10 = arith.constant 0 : index
    %17 = vector.load %arg9[%c0_9, %c0_10] : memref<8x32xf32, #tpu.memory_space<vmem>>, vector<8x32xf32>
    tpu.vector_store %arg9[%c0_9, %c0_10], %16 {strides = array<i32>} : memref<8x32xf32, #tpu.memory_space<vmem>>, vector<8x32xf32>,
    %c0_11 = arith.constant 0 : index
    %c0_12 = arith.constant 0 : index
    %18 = vector.load %arg6[%c0_11, %c0_12] : memref<32x64xf32, #tpu.memory_space<vmem>>, vector<32x64xf32>
    %cst_13 = arith.constant dense<0.000000e+00> : vector<24x64xf32>
    %19 = tpu.matmul %11, %18, %cst_13 {dimension_numbers = #tpu.dot_dimension_numbers<[1], [0], [0], [1], [0, 0, 1, 1], [], []>} : vector<24x32xf32>, vector<32x64xf32>, vector<24x64xf32> -> vector<24x64xf32>
    %c0_14 = arith.constant 0 : index
    %c0_15 = arith.constant 0 : index
    %20 = vector.load %arg7[%c0_14, %c0_15] : memref<1x64xf32, #tpu.memory_space<vmem>>, vector<1x64xf32>
    %21 = vector.broadcast %20 : vector<1x64xf32> to vector<24x64xf32>
    %22 = arith.addf %19, %21 : vector<24x64xf32>
    %c0_16 = arith.constant 0 : index
    %c0_17 = arith.constant 0 : index
    %23 = vector.load %arg10[%c0_16, %c0_17] : memref<24x64xf32, #tpu.memory_space<vmem>>, vector<24x64xf32>
    tpu.vector_store %arg10[%c0_16, %c0_17], %22 {strides = array<i32>} : memref<24x64xf32, #tpu.memory_space<vmem>>, vector<24x64xf32>,
    %24 = arith.index_cast %arg0 : i32 to index
    %25 = memref.load %arg2[%24] : memref<2xi32, #tpu.memory_space<smem>>
    %26 = tpu.iota {dimensions = array<i32: 0>} : vector<8x24xi32>
    %27 = vector.broadcast %0 : i32 to vector<8x24xi32>
    %28 = arith.addi %26, %27 : vector<8x24xi32>
    %29 = tpu.iota {dimensions = array<i32: 1>} : vector<8x24xi32>
    %30 = vector.broadcast %4 : i32 to vector<8x24xi32>
    %31 = arith.addi %29, %30 : vector<8x24xi32>
    %c4_i32 = arith.constant 4 : i32
    %32 = vector.broadcast %c4_i32 : i32 to vector<8x24xi32>
    %33 = arith.subi %28, %32 : vector<8x24xi32>
    %34 = arith.cmpi sge, %31, %33 : vector<8x24xi32>
    %c2_i32 = arith.constant 2 : i32
    %35 = vector.broadcast %c2_i32 : i32 to vector<8x24xi32>
    %36 = arith.addi %28, %35 : vector<8x24xi32>
    %37 = arith.cmpi sle, %31, %36 : vector<8x24xi32>
    %38 = arith.andi %34, %37 : vector<8x24xi1>
    %39 = vector.broadcast %25 : i32 to vector<8x24xi32>
    %40 = arith.cmpi slt, %31, %39 : vector<8x24xi32>
    %41 = arith.andi %38, %40 : vector<8x24xi1>
    %c0_18 = arith.constant 0 : index
    %c0_19 = arith.constant 0 : index
    %42 = vector.load %arg9[%c0_18, %c0_19] : memref<8x32xf32, #tpu.memory_space<vmem>>, vector<8x8xf32>
    %c0_20 = arith.constant 0 : index
    %c0_21 = arith.constant 0 : index
    %43 = vector.load %arg10[%c0_20, %c0_21] : memref<24x64xf32, #tpu.memory_space<vmem>>, vector<24x8xf32>
    %c0_22 = arith.constant 0 : index
    %c32 = arith.constant 32 : index
    %44 = vector.load %arg10[%c0_22, %c32] : memref<24x64xf32, #tpu.memory_space<vmem>>, vector<24x8xf32>
    %cst_23 = arith.constant dense<0.000000e+00> : vector<8x24xf32>
    %45 = tpu.matmul %42, %43, %cst_23 {dimension_numbers = #tpu.dot_dimension_numbers<[1], [1], [0], [0], [0, 0, 1, 0], [], []>} : vector<8x8xf32>, vector<24x8xf32>, vector<8x24xf32> -> vector<8x24xf32>
    %cst_24 = arith.constant -3.125000e+13 : f32
    %46 = vector.broadcast %cst_24 : f32 to vector<8x24xf32>
    %47 = arith.select %41, %45, %46 : vector<8x24xi1>, vector<8x24xf32>
    %cst_25 = arith.constant dense<0xFF800000> : vector<8xf32>
    %48 = vector.multi_reduction <maximumf>, %47, %cst_25 [1] : vector<8x24xf32> to vector<8xf32>
    %49 = vector.shape_cast %48 : vector<8xf32> to vector<8x1xf32>
    %50 = vector.broadcast %49 : vector<8x1xf32> to vector<8x24xf32>
    %51 = arith.subf %47, %50 : vector<8x24xf32>
    %52 = math.exp %51 : vector<8x24xf32>
    %cst_26 = arith.constant dense<0.000000e+00> : vector<8xf32>
    %53 = vector.multi_reduction <add>, %52, %cst_26 [1] : vector<8x24xf32> to vector<8xf32>
    %54 = vector.shape_cast %53 : vector<8xf32> to vector<8x1xf32>
    %55 = tpu.reciprocal %54 {approx = true} : vector<8x1xf32> -> vector<8x1xf32>
    %cst_27 = arith.constant dense<0.000000e+00> : vector<8x8xf32>
    %56 = tpu.matmul %52, %44, %cst_27 {dimension_numbers = #tpu.dot_dimension_numbers<[1], [0], [0], [1], [0, 0, 1, 1], [], []>} : vector<8x24xf32>, vector<24x8xf32>, vector<8x8xf32> -> vector<8x8xf32>
    %57 = vector.broadcast %55 : vector<8x1xf32> to vector<8x8xf32>
    %58 = arith.mulf %56, %57 : vector<8x8xf32>
    %c0_28 = arith.constant 0 : index
    %c0_29 = arith.constant 0 : index
    %59 = vector.load %arg11[%c0_28, %c0_29] : memref<8x32xf32, #tpu.memory_space<vmem>>, vector<8x8xf32>
    tpu.vector_store %arg11[%c0_28, %c0_29], %58 {strides = array<i32>} : memref<8x32xf32, #tpu.memory_space<vmem>>, vector<8x8xf32>,
    %c0_30 = arith.constant 0 : index
    %c8 = arith.constant 8 : index
    %60 = vector.load %arg9[%c0_30, %c8] : memref<8x32xf32, #tpu.memory_space<vmem>>, vector<8x8xf32>
    %c0_31 = arith.constant 0 : index
    %c8_32 = arith.constant 8 : index
    %61 = vector.load %arg10[%c0_31, %c8_32] : memref<24x64xf32, #tpu.memory_space<vmem>>, vector<24x8xf32>
    %c0_33 = arith.constant 0 : index
    %c40 = arith.constant 40 : index
    %62 = vector.load %arg10[%c0_33, %c40] : memref<24x64xf32, #tpu.memory_space<vmem>>, vector<24x8xf32>
    %cst_34 = arith.constant dense<0.000000e+00> : vector<8x24xf32>
    %63 = tpu.matmul %60, %61, %cst_34 {dimension_numbers = #tpu.dot_dimension_numbers<[1], [1], [0], [0], [0, 0, 1, 0], [], []>} : vector<8x8xf32>, vector<24x8xf32>, vector<8x24xf32> -> vector<8x24xf32>
    %cst_35 = arith.constant -3.125000e+13 : f32
    %64 = vector.broadcast %cst_35 : f32 to vector<8x24xf32>
    %65 = arith.select %41, %63, %64 : vector<8x24xi1>, vector<8x24xf32>
    %cst_36 = arith.constant dense<0xFF800000> : vector<8xf32>
    %66 = vector.multi_reduction <maximumf>, %65, %cst_36 [1] : vector<8x24xf32> to vector<8xf32>
    %67 = vector.shape_cast %66 : vector<8xf32> to vector<8x1xf32>
    %68 = vector.broadcast %67 : vector<8x1xf32> to vector<8x24xf32>
    %69 = arith.subf %65, %68 : vector<8x24xf32>
    %70 = math.exp %69 : vector<8x24xf32>
    %cst_37 = arith.constant dense<0.000000e+00> : vector<8xf32>
    %71 = vector.multi_reduction <add>, %70, %cst_37 [1] : vector<8x24xf32> to vector<8xf32>
    %72 = vector.shape_cast %71 : vector<8xf32> to vector<8x1xf32>
    %73 = tpu.reciprocal %72 {approx = true} : vector<8x1xf32> -> vector<8x1xf32>
    %cst_38 = arith.constant dense<0.000000e+00> : vector<8x8xf32>
    %74 = tpu.matmul %70, %62, %cst_38 {dimension_numbers = #tpu.dot_dimension_numbers<[1], [0], [0], [1], [0, 0, 1, 1], [], []>} : vector<8x24xf32>, vector<24x8xf32>, vector<8x8xf32> -> vector<8x8xf32>
    %75 = vector.broadcast %73 : vector<8x1xf32> to vector<8x8xf32>
    %76 = arith.mulf %74, %75 : vector<8x8xf32>
    %c0_39 = arith.constant 0 : index
    %c8_40 = arith.constant 8 : index
    %77 = vector.load %arg11[%c0_39, %c8_40] : memref<8x32xf32, #tpu.memory_space<vmem>>, vector<8x8xf32>
    tpu.vector_store %arg11[%c0_39, %c8_40], %76 {strides = array<i32>} : memref<8x32xf32, #tpu.memory_space<vmem>>, vector<8x8xf32>,
    %c0_41 = arith.constant 0 : index
    %c16 = arith.constant 16 : index
    %78 = vector.load %arg9[%c0_41, %c16] : memref<8x32xf32, #tpu.memory_space<vmem>>, vector<8x8xf32>
    %c0_42 = arith.constant 0 : index
    %c16_43 = arith.constant 16 : index
    %79 = vector.load %arg10[%c0_42, %c16_43] : memref<24x64xf32, #tpu.memory_space<vmem>>, vector<24x8xf32>
    %c0_44 = arith.constant 0 : index
    %c48 = arith.constant 48 : index
    %80 = vector.load %arg10[%c0_44, %c48] : memref<24x64xf32, #tpu.memory_space<vmem>>, vector<24x8xf32>
    %cst_45 = arith.constant dense<0.000000e+00> : vector<8x24xf32>
    %81 = tpu.matmul %78, %79, %cst_45 {dimension_numbers = #tpu.dot_dimension_numbers<[1], [1], [0], [0], [0, 0, 1, 0], [], []>} : vector<8x8xf32>, vector<24x8xf32>, vector<8x24xf32> -> vector<8x24xf32>
    %cst_46 = arith.constant -3.125000e+13 : f32
    %82 = vector.broadcast %cst_46 : f32 to vector<8x24xf32>
    %83 = arith.select %41, %81, %82 : vector<8x24xi1>, vector<8x24xf32>
    %cst_47 = arith.constant dense<0xFF800000> : vector<8xf32>
    %84 = vector.multi_reduction <maximumf>, %83, %cst_47 [1] : vector<8x24xf32> to vector<8xf32>
    %85 = vector.shape_cast %84 : vector<8xf32> to vector<8x1xf32>
    %86 = vector.broadcast %85 : vector<8x1xf32> to vector<8x24xf32>
    %87 = arith.subf %83, %86 : vector<8x24xf32>
    %88 = math.exp %87 : vector<8x24xf32>
    %cst_48 = arith.constant dense<0.000000e+00> : vector<8xf32>
    %89 = vector.multi_reduction <add>, %88, %cst_48 [1] : vector<8x24xf32> to vector<8xf32>
    %90 = vector.shape_cast %89 : vector<8xf32> to vector<8x1xf32>
    %91 = tpu.reciprocal %90 {approx = true} : vector<8x1xf32> -> vector<8x1xf32>
    %cst_49 = arith.constant dense<0.000000e+00> : vector<8x8xf32>
    %92 = tpu.matmul %88, %80, %cst_49 {dimension_numbers = #tpu.dot_dimension_numbers<[1], [0], [0], [1], [0, 0, 1, 1], [], []>} : vector<8x24xf32>, vector<24x8xf32>, vector<8x8xf32> -> vector<8x8xf32>
    %93 = vector.broadcast %91 : vector<8x1xf32> to vector<8x8xf32>
    %94 = arith.mulf %92, %93 : vector<8x8xf32>
    %c0_50 = arith.constant 0 : index
    %c16_51 = arith.constant 16 : index
    %95 = vector.load %arg11[%c0_50, %c16_51] : memref<8x32xf32, #tpu.memory_space<vmem>>, vector<8x8xf32>
    tpu.vector_store %arg11[%c0_50, %c16_51], %94 {strides = array<i32>} : memref<8x32xf32, #tpu.memory_space<vmem>>, vector<8x8xf32>,
    %c0_52 = arith.constant 0 : index
    %c24 = arith.constant 24 : index
    %96 = vector.load %arg9[%c0_52, %c24] : memref<8x32xf32, #tpu.memory_space<vmem>>, vector<8x8xf32>
    %c0_53 = arith.constant 0 : index
    %c24_54 = arith.constant 24 : index
    %97 = vector.load %arg10[%c0_53, %c24_54] : memref<24x64xf32, #tpu.memory_space<vmem>>, vector<24x8xf32>
    %c0_55 = arith.constant 0 : index
    %c56 = arith.constant 56 : index
    %98 = vector.load %arg10[%c0_55, %c56] : memref<24x64xf32, #tpu.memory_space<vmem>>, vector<24x8xf32>
    %cst_56 = arith.constant dense<0.000000e+00> : vector<8x24xf32>
    %99 = tpu.matmul %96, %97, %cst_56 {dimension_numbers = #tpu.dot_dimension_numbers<[1], [1], [0], [0], [0, 0, 1, 0], [], []>} : vector<8x8xf32>, vector<24x8xf32>, vector<8x24xf32> -> vector<8x24xf32>
    %cst_57 = arith.constant -3.125000e+13 : f32
    %100 = vector.broadcast %cst_57 : f32 to vector<8x24xf32>
    %101 = arith.select %41, %99, %100 : vector<8x24xi1>, vector<8x24xf32>
    %cst_58 = arith.constant dense<0xFF800000> : vector<8xf32>
    %102 = vector.multi_reduction <maximumf>, %101, %cst_58 [1] : vector<8x24xf32> to vector<8xf32>
    %103 = vector.shape_cast %102 : vector<8xf32> to vector<8x1xf32>
    %104 = vector.broadcast %103 : vector<8x1xf32> to vector<8x24xf32>
    %105 = arith.subf %101, %104 : vector<8x24xf32>
    %106 = math.exp %105 : vector<8x24xf32>
    %cst_59 = arith.constant dense<0.000000e+00> : vector<8xf32>
    %107 = vector.multi_reduction <add>, %106, %cst_59 [1] : vector<8x24xf32> to vector<8xf32>
    %108 = vector.shape_cast %107 : vector<8xf32> to vector<8x1xf32>
    %109 = tpu.reciprocal %108 {approx = true} : vector<8x1xf32> -> vector<8x1xf32>
    %cst_60 = arith.constant dense<0.000000e+00> : vector<8x8xf32>
    %110 = tpu.matmul %106, %98, %cst_60 {dimension_numbers = #tpu.dot_dimension_numbers<[1], [0], [0], [1], [0, 0, 1, 1], [], []>} : vector<8x24xf32>, vector<24x8xf32>, vector<8x8xf32> -> vector<8x8xf32>
    %111 = vector.broadcast %109 : vector<8x1xf32> to vector<8x8xf32>
    %112 = arith.mulf %110, %111 : vector<8x8xf32>
    %c0_61 = arith.constant 0 : index
    %c24_62 = arith.constant 24 : index
    %113 = vector.load %arg11[%c0_61, %c24_62] : memref<8x32xf32, #tpu.memory_space<vmem>>, vector<8x8xf32>
    tpu.vector_store %arg11[%c0_61, %c24_62], %112 {strides = array<i32>} : memref<8x32xf32, #tpu.memory_space<vmem>>, vector<8x8xf32>,
    %c0_63 = arith.constant 0 : index
    %c0_64 = arith.constant 0 : index
    %114 = vector.load %arg11[%c0_63, %c0_64] : memref<8x32xf32, #tpu.memory_space<vmem>>, vector<8x32xf32>
    %c0_65 = arith.constant 0 : index
    %c0_66 = arith.constant 0 : index
    %c0_67 = arith.constant 0 : index
    %115 = vector.load %arg8[%c0_65, %c0_66, %c0_67] : memref<1x8x32xf32, #tpu.memory_space<vmem>>, vector<1x8x32xf32>
    %116 = vector.shape_cast %115 : vector<1x8x32xf32> to vector<8x32xf32>
    %117 = vector.shape_cast %114 : vector<8x32xf32> to vector<1x8x32xf32>
    tpu.vector_store %arg8[%c0_65, %c0_66, %c0_67], %117 {strides = array<i32>} : memref<1x8x32xf32, #tpu.memory_space<vmem>>, vector<1x8x32xf32>,
    return
  }
  func.func @transform_0(%arg0: i32, %arg1: i32, %arg2: memref<2xi32, #tpu.memory_space<smem>>) -> (i32, i32, i32) {
    %c0_i32 = arith.constant 0 : i32
    %c0_i32_0 = arith.constant 0 : i32
    %c0_i32_1 = arith.constant 0 : i32
    return %arg0, %c0_i32, %c0_i32_0 : i32, i32, i32
  }
  func.func @transform_1(%arg0: i32, %arg1: i32, %arg2: memref<2xi32, #tpu.memory_space<smem>>) -> (i32, i32) {
    %c0_i32 = arith.constant 0 : i32
    %c0_i32_0 = arith.constant 0 : i32
    %c0_i32_1 = arith.constant 0 : i32
    return %c0_i32, %c0_i32_0 : i32, i32
  }
  func.func @transform_2(%arg0: i32, %arg1: i32, %arg2: memref<2xi32, #tpu.memory_space<smem>>) -> (i32, i32) {
    %c0_i32 = arith.constant 0 : i32
    %c0_i32_0 = arith.constant 0 : i32
    %c0_i32_1 = arith.constant 0 : i32
    return %c0_i32, %c0_i32_0 : i32, i32
  }
  func.func @transform_3(%arg0: i32, %arg1: i32, %arg2: memref<2xi32, #tpu.memory_space<smem>>) -> (i32, i32) {
    %c0_i32 = arith.constant 0 : i32
    %c0_i32_0 = arith.constant 0 : i32
    %c0_i32_1 = arith.constant 0 : i32
    return %c0_i32, %c0_i32_0 : i32, i32
  }
  func.func @transform_4(%arg0: i32, %arg1: i32, %arg2: memref<2xi32, #tpu.memory_space<smem>>) -> (i32, i32) {
    %c0_i32 = arith.constant 0 : i32
    %c0_i32_0 = arith.constant 0 : i32
    %c0_i32_1 = arith.constant 0 : i32
    return %c0_i32, %c0_i32_0 : i32, i32
  }
  func.func @transform_5(%arg0: i32, %arg1: i32, %arg2: memref<2xi32, #tpu.memory_space<smem>>) -> (i32, i32, i32) {
    %c0_i32 = arith.constant 0 : i32
    %c0_i32_0 = arith.constant 0 : i32
    return %arg0, %arg1, %c0_i32 : i32, i32, i32
  }
}

</mosaic_0001>

<llo_original>
// kernel: tpu_custom_call.1
$region0: #{tpu_custom_call.1}
  #allocation0 [shape = 'u32[]', space=smem, size = 0x4, offset = 0x4, fixed_abs, tag = 'smem constant byte address 0x4 - core index']
  #allocation1 [shape = 'u32[144,128]{1,0:T(1,128)}', space=vmem, size = 0x12000, scoped, tag = 'internal scratch']
  #allocation2 [shape = 'f32[8,32]{1,0:T(8,128)}', space=vmem, size = 0x1000, scoped, tag = 'scratch operand']
  #allocation3 [shape = 'f32[24,64]{1,0:T(8,128)}', space=vmem, size = 0x3000, scoped, tag = 'scratch operand']
  #allocation4 [shape = 'f32[8,32]{1,0:T(8,128)}', space=vmem, size = 0x1000, scoped, tag = 'scratch operand']
  #allocation5 [shape = 's32[1]{0}', space=sflag, size = 0x4, scoped, tag = 'scoped memory for tpu_custom_call.1']
  #allocation6 [shape = 'u8[512]{0}', space=smem, size = 0x200, scoped, tag = 'prefetched SMEM operand 0']
  %s0 = inlined_call_operand.hbm [shape: s32[2], index: 0, kind: input, shape index: {}]
  %s1 = inlined_call_operand.hbm [shape: f32[2,32,32], index: 1, kind: input, shape index: {}]
  %s2 = inlined_call_operand.hbm [shape: f32[32,32], index: 2, kind: input, shape index: {}]
  %s3 = inlined_call_operand.vmem [shape: f32[1,32], index: 3, kind: input, shape index: {}]
  %s4 = inlined_call_operand.hbm [shape: f32[32,64], index: 4, kind: input, shape index: {}]
  %s5 = inlined_call_operand.vmem [shape: f32[1,64], index: 5, kind: input, shape index: {}]
  %s6 = inlined_call_operand.hbm [shape: f32[2,32,32], index: 6, kind: output, shape index: {}]
  %s7 = sld [smem:[#allocation0]]
  $region65: #{tpu_custom_call.1} parent=0
    _
  %s9 = ssub.s32 1, %s7
  %s10 = scalar_select 0, %s9, %s7
  %12 = dma.hbm_to_smem %s0, 16, [#allocation6], [#allocation5]
  %13 = dma.done [#allocation5], 16
  %14 = sfence
  $region1: #{tpu_custom_call.1} parent=0
    #allocation7 [shape = 'u8[32768]{0}', space=vmem, size = 0x8000, scoped, tag = 'input window, operand 1']
    #allocation8 [shape = 's32[2]{0}', space=sflag, size = 0x8, scoped, tag = 'scoped memory for tpu_custom_call.1']
    #allocation9 [shape = 's32[2]{0}', space=sflag, size = 0x8, scoped, tag = 'scoped memory for tpu_custom_call.1']
    #allocation10 [shape = 'u8[16384]{0}', space=vmem, size = 0x4000, scoped, tag = 'input window, operand 2, single buffered']
    #allocation11 [shape = 's32[1]{0}', space=sflag, size = 0x4, scoped, tag = 'scoped memory for tpu_custom_call.1']
    #allocation12 [shape = 'u8[16384]{0}', space=vmem, size = 0x4000, scoped, tag = 'input window, operand 4, single buffered']
    #allocation13 [shape = 'u8[8192]{0}', space=vmem, size = 0x2000, scoped, tag = 'output window, operand 0']
    %15 = vsyncpa [#allocation8], 0
    %s16 = scalar_lea.sflag [#allocation8], 1
    %17 = vsyncpa %s16, 0
    %18 = vsyncpa [#allocation11], 0
    %19 = vsyncpa [#allocation9], 0
    %s20 = scalar_lea.sflag [#allocation9], 1
    %21 = vsyncpa %s20, 0
    loop: start=0, step=1, limit=10
    $region2: #{tpu_custom_call.1} parent=1 // loop_pre_header
      _
    $region3: #{tpu_custom_call.1} parent=1 // loop_header
      %s23 = sphi 0, %s27
      %p24 = scmp.ge.s32.totalorder %s23, 10
      %s30 = sphi 0, %s42
      %s31 = sphi 0, %s38
      %s32 = sphi 0, %s30
      %s33 = sphi 0, %s31
      %s34 = sphi 0, %s32
      %s35 = sphi 0, %s33
      %s45 = sphi 0, %s47
      %s48 = sphi 0, %s45
      %s49 = sphi 0, %s48
      %s65 = sphi 0, %s49
      %s69 = sphi 0, %s69
      %s71 = sphi 0, %s69
      %s72 = sphi 0, %s71
      %s86 = sphi 0, %s72
      %s90 = sphi 0, %s90
      %s92 = sphi 0, %s90
      %s93 = sphi 0, %s92
      %s107 = sphi 0, %s93
      %s111 = sphi 0, %s111
      %s113 = sphi 0, %s111
      %s114 = sphi 0, %s113
      %s128 = sphi 0, %s114
      %s132 = sphi 0, %s132
      %s134 = sphi 0, %s132
      %s135 = sphi 0, %s134
      %s149 = sphi 0, %s135
      %s157 = sphi 0, %s159
      %s160 = sphi 0, %s157
      %s161 = sphi 0, %s160
      %s177 = sphi 0, %s161
    $region4: #{tpu_custom_call.1} parent=1 // loop_header_branch
      %26 = sbr.rel (%p24) target = $region8
    $region5: #{tpu_custom_call.1} parent=1 // loop_body
      %s28 = ssub.s32 %s23, 1
      %s29 = ssub.s32 %s23, 2
      %s36 = sadd.s32 1, %s31
      %p37 = scmp.ge.s32.totalorder %s36, 4
      %s38 = scalar_select %p37, 0, %s36
      %s39 = sadd.s32 1, %s30
      %s40 = scalar_select %p37, %s39, %s30
      %p41 = scmp.ge.s32.totalorder %s40, 2
      %s42 = scalar_select %p41, 0, %s40
      %s43 = ssub.s32 %s30, %s42
      %p44 = scmp.eq.s32.totalorder %s43, 0
      %s46 = sadd.s32 %s45, 1
      %s47 = scalar_select %p44, %s45, %s46
      %p50 = pneg %p44
      %p51 = scmp.eq.s32.totalorder %s23, 7
      %p52 = por %p50, %p51
      %p53 = scmp.ne.s32.totalorder %s45, %s48
      %p54 = scmp.eq.s32.totalorder %s23, 0
      %p55 = por %p53, %p54
      %p56 = scmp.ne.s32.totalorder %s45, %s48
      %p57 = scmp.eq.s32.totalorder %s28, 7
      %p58 = por %p56, %p57
      %p59 = scmp.ne.s32.totalorder %s48, %s49
      %p60 = scmp.eq.s32.totalorder %s28, 0
      %p61 = por %p59, %p60
      %p62 = scmp.ne.s32.totalorder %s48, %s49
      %p63 = scmp.eq.s32.totalorder %s29, 7
      %p64 = por %p62, %p63
      %p66 = scmp.ne.s32.totalorder %s49, %s65
      %p67 = scmp.eq.s32.totalorder %s29, 0
      %p68 = por %p66, %p67
      %s70 = sadd.s32 %s69, 1
      %p73 = scmp.eq.s32.totalorder %s23, 7
      %p74 = scmp.ne.s32.totalorder %s69, %s71
      %p75 = scmp.eq.s32.totalorder %s23, 0
      %p76 = por %p74, %p75
      %p77 = scmp.ne.s32.totalorder %s69, %s71
      %p78 = scmp.eq.s32.totalorder %s28, 7
      %p79 = por %p77, %p78
      %p80 = scmp.ne.s32.totalorder %s71, %s72
      %p81 = scmp.eq.s32.totalorder %s28, 0
      %p82 = por %p80, %p81
      %p83 = scmp.ne.s32.totalorder %s71, %s72
      %p84 = scmp.eq.s32.totalorder %s29, 7
      %p85 = por %p83, %p84
      %p87 = scmp.ne.s32.totalorder %s72, %s86
      %p88 = scmp.eq.s32.totalorder %s29, 0
      %p89 = por %p87, %p88
      %s91 = sadd.s32 %s90, 1
      %p94 = scmp.eq.s32.totalorder %s23, 7
      %p95 = scmp.ne.s32.totalorder %s90, %s92
      %p96 = scmp.eq.s32.totalorder %s23, 0
      %p97 = por %p95, %p96
      %p98 = scmp.ne.s32.totalorder %s90, %s92
      %p99 = scmp.eq.s32.totalorder %s28, 7
      %p100 = por %p98, %p99
      %p101 = scmp.ne.s32.totalorder %s92, %s93
      %p102 = scmp.eq.s32.totalorder %s28, 0
      %p103 = por %p101, %p102
      %p104 = scmp.ne.s32.totalorder %s92, %s93
      %p105 = scmp.eq.s32.totalorder %s29, 7
      %p106 = por %p104, %p105
      %p108 = scmp.ne.s32.totalorder %s93, %s107
      %p109 = scmp.eq.s32.totalorder %s29, 0
      %p110 = por %p108, %p109
      %s112 = sadd.s32 %s111, 1
      %p115 = scmp.eq.s32.totalorder %s23, 7
      %p116 = scmp.ne.s32.totalorder %s111, %s113
      %p117 = scmp.eq.s32.totalorder %s23, 0
      %p118 = por %p116, %p117
      %p119 = scmp.ne.s32.totalorder %s111, %s113
      %p120 = scmp.eq.s32.totalorder %s28, 7
      %p121 = por %p119, %p120
      %p122 = scmp.ne.s32.totalorder %s113, %s114
      %p123 = scmp.eq.s32.totalorder %s28, 0
      %p124 = por %p122, %p123
      %p125 = scmp.ne.s32.totalorder %s113, %s114
      %p126 = scmp.eq.s32.totalorder %s29, 7
      %p127 = por %p125, %p126
      %p129 = scmp.ne.s32.totalorder %s114, %s128
      %p130 = scmp.eq.s32.totalorder %s29, 0
      %p131 = por %p129, %p130
      %s133 = sadd.s32 %s132, 1
      %p136 = scmp.eq.s32.totalorder %s23, 7
      %p137 = scmp.ne.s32.totalorder %s132, %s134
      %p138 = scmp.eq.s32.totalorder %s23, 0
      %p139 = por %p137, %p138
      %p140 = scmp.ne.s32.totalorder %s132, %s134
      %p141 = scmp.eq.s32.totalorder %s28, 7
      %p142 = por %p140, %p141
      %p143 = scmp.ne.s32.totalorder %s134, %s135
      %p144 = scmp.eq.s32.totalorder %s28, 0
      %p145 = por %p143, %p144
      %p146 = scmp.ne.s32.totalorder %s134, %s135
      %p147 = scmp.eq.s32.totalorder %s29, 7
      %p148 = por %p146, %p147
      %p150 = scmp.ne.s32.totalorder %s135, %s149
      %p151 = scmp.eq.s32.totalorder %s29, 0
      %p152 = por %p150, %p151
      %s153 = ssub.s32 %s30, %s42
      %s154 = ssub.s32 %s31, %s38
      %s155 = sor.u32 %s153, %s154
      %p156 = scmp.eq.s32.totalorder %s155, 0
      %s158 = sadd.s32 %s157, 1
      %s159 = scalar_select %p156, %s157, %s158
      %p162 = pneg %p156
      %p163 = scmp.eq.s32.totalorder %s23, 7
      %p164 = por %p162, %p163
      %p165 = scmp.ne.s32.totalorder %s157, %s160
      %p166 = scmp.eq.s32.totalorder %s23, 0
      %p167 = por %p165, %p166
      %p168 = scmp.ne.s32.totalorder %s157, %s160
      %p169 = scmp.eq.s32.totalorder %s28, 7
      %p170 = por %p168, %p169
      %p171 = scmp.ne.s32.totalorder %s160, %s161
      %p172 = scmp.eq.s32.totalorder %s28, 0
      %p173 = por %p171, %p172
      %p174 = scmp.ne.s32.totalorder %s160, %s161
      %p175 = scmp.eq.s32.totalorder %s29, 7
      %p176 = por %p174, %p175
      %p178 = scmp.ne.s32.totalorder %s161, %s177
      %p179 = scmp.eq.s32.totalorder %s29, 0
      %p180 = por %p178, %p179
      %p181 = scmp.le.s32.totalorder 1, %s23
      %p182 = scmp.lt.s32.totalorder %s23, 9
      %p183 = pnand %p181, %p182
      %p184 = pneg %p183
      // Predicated region
      $region9: #{tpu_custom_call.1} parent=5 // pred_check
        _
      $region10: #{tpu_custom_call.1} parent=5 // pred_check_branch
        %186 = sbr.rel (%p183) target = $region12
      $region11: #{tpu_custom_call.1} parent=5 // pred_region
        %s187 = ssub.s32 %s23, 1
        // Predicated region
        $region13: #{tpu_custom_call.1} parent=11 // pred_check
          %p188 = pneg %p82
        $region14: #{tpu_custom_call.1} parent=11 // pred_check_branch
          %190 = sbr.rel (%p188) target = $region16
        $region15: #{tpu_custom_call.1} parent=11 // pred_region
          %s192 = ssub.s32 512, 512
          %193 = vsyncadd [#allocation11], %s192
          %s194 = sshll.u32 [#allocation10], 4
          %s195 = int_to_ptr.vmem [resolvable:$true] %s194
          %200 = dma.hbm_to_vmem [thread:$0]  %s2, 512, %s195, [#allocation11], 128, 128, 8
        $region16: #{tpu_custom_call.1} parent=11 // pred_fallthru
          _
        // Predicated region
        $region17: #{tpu_custom_call.1} parent=11 // pred_check
          %p201 = pneg %p103
        $region18: #{tpu_custom_call.1} parent=11 // pred_check_branch
          %203 = sbr.rel (%p201) target = $region20
        $region19: #{tpu_custom_call.1} parent=11 // pred_region
          _
        $region20: #{tpu_custom_call.1} parent=11 // pred_fallthru
          _
        // Predicated region
        $region21: #{tpu_custom_call.1} parent=11 // pred_check
          %p204 = pneg %p124
        $region22: #{tpu_custom_call.1} parent=11 // pred_check_branch
          %206 = sbr.rel (%p204) target = $region24
        $region23: #{tpu_custom_call.1} parent=11 // pred_region
          %s208 = ssub.s32 512, 512
          %209 = vsyncadd [#allocation11], %s208
          %s210 = sshll.u32 [#allocation12], 4
          %s211 = int_to_ptr.vmem [resolvable:$true] %s210
          %216 = dma.hbm_to_vmem [thread:$0]  %s4, 512, %s211, [#allocation11], 128, 128, 8
        $region24: #{tpu_custom_call.1} parent=11 // pred_fallthru
          _
        // Predicated region
        $region25: #{tpu_custom_call.1} parent=11 // pred_check
          %p217 = pneg %p145
        $region26: #{tpu_custom_call.1} parent=11 // pred_check_branch
          %219 = sbr.rel (%p217) target = $region28
        $region27: #{tpu_custom_call.1} parent=11 // pred_region
          _
        $region28: #{tpu_custom_call.1} parent=11 // pred_fallthru
          _
      $region12: #{tpu_custom_call.1} parent=5 // pred_fallthru
        _
      %p220 = scmp.lt.s32.totalorder %s23, 8
      // Predicated region
      $region29: #{tpu_custom_call.1} parent=5 // pred_check
        %p221 = pneg %p220
      $region30: #{tpu_custom_call.1} parent=5 // pred_check_branch
        %223 = sbr.rel (%p221) target = $region32
      $region31: #{tpu_custom_call.1} parent=5 // pred_region
        // Predicated region
        $region33: #{tpu_custom_call.1} parent=31 // pred_check
          %p224 = pneg %p55
        $region34: #{tpu_custom_call.1} parent=31 // pred_check_branch
          %226 = sbr.rel (%p224) target = $region36
        $region35: #{tpu_custom_call.1} parent=31 // pred_region
          %s227 = sand.u32 %s45, 1
          %s228 = scalar_lea.sflag [#allocation8], %s227
          %s229 = sand.u32 %s45, 1
          %s230 = smul.addr %s229, 32
          %s231 = scalar_lea.vmem [#allocation7], %s230
          %s233 = ssub.s32 512, 512
          %234 = vsyncadd %s228, %s233
          %s235 = smul.addr %s30, 4
          %s236 = smul.addr %s235, 128
          %s237 = scalar_lea.hbm %s1, %s236
          %s238 = sshll.u32 %s231, 4
          %s239 = int_to_ptr.vmem [resolvable:$true] %s238
          %244 = dma.hbm_to_vmem [thread:$0]  %s237, 512, %s239, %s228, 128, 128, 8
        $region36: #{tpu_custom_call.1} parent=31 // pred_fallthru
          _
      $region32: #{tpu_custom_call.1} parent=5 // pred_fallthru
        _
      %p245 = scmp.le.s32.totalorder 1, %s23
      %p246 = scmp.lt.s32.totalorder %s23, 9
      %p247 = pnand %p245, %p246
      %p248 = pneg %p247
      // Predicated region
      $region37: #{tpu_custom_call.1} parent=5 // pred_check
        _
      $region38: #{tpu_custom_call.1} parent=5 // pred_check_branch
        %250 = sbr.rel (%p247) target = $region40
      $region39: #{tpu_custom_call.1} parent=5 // pred_region
        %s251 = ssub.s32 %s23, 1
        %s252 = sand.u32 %s48, 1
        %s253 = scalar_lea.sflag [#allocation8], %s252
        %s254 = sand.u32 %s48, 1
        %s255 = smul.addr %s254, 32
        %s256 = scalar_lea.vmem [#allocation7], %s255
        // Predicated region
        $region41: #{tpu_custom_call.1} parent=39 // pred_check
          %p257 = pneg %p61
        $region42: #{tpu_custom_call.1} parent=39 // pred_check_branch
          %259 = sbr.rel (%p257) target = $region44
        $region43: #{tpu_custom_call.1} parent=39 // pred_region
          %260 = dma.done %s253, 512
        $region44: #{tpu_custom_call.1} parent=39 // pred_fallthru
          _
        // Predicated region
        $region45: #{tpu_custom_call.1} parent=39 // pred_check
          %p261 = pneg %p82
        $region46: #{tpu_custom_call.1} parent=39 // pred_check_branch
          %263 = sbr.rel (%p261) target = $region48
        $region47: #{tpu_custom_call.1} parent=39 // pred_region
          %264 = dma.done [#allocation11], 512
        $region48: #{tpu_custom_call.1} parent=39 // pred_fallthru
          _
        // Predicated region
        $region49: #{tpu_custom_call.1} parent=39 // pred_check
          %p265 = pneg %p124
        $region50: #{tpu_custom_call.1} parent=39 // pred_check_branch
          %267 = sbr.rel (%p265) target = $region52
        $region51: #{tpu_custom_call.1} parent=39 // pred_region
          %268 = dma.done [#allocation11], 512
        $region52: #{tpu_custom_call.1} parent=39 // pred_fallthru
          _
        %s269 = sand.u32 %s48, 1
        %s270 = scalar_lea.sflag [#allocation8], %s269
        %s271 = sand.u32 %s48, 1
        %s272 = smul.addr %s271, 32
        %s273 = scalar_lea.vmem [#allocation7], %s272
        %p274 = pneg %p61
        %p275 = pneg %p58
        %p276 = pneg %p82
        %p277 = pneg %p79
        %p278 = pneg %p103
        %p279 = pneg %p100
        %p280 = pneg %p124
        %p281 = pneg %p121
        %p282 = pneg %p145
        %p283 = pneg %p142
        %p284 = pneg %p173
        %p285 = pneg %p170
        %s286 = sand.u32 %s160, 1
        %s287 = scalar_lea.sflag [#allocation9], %s286
        %s288 = sand.u32 %s160, 1
        %s289 = smul.addr %s288, 8
        %s290 = scalar_lea.vmem [#allocation13], %s289
        %s291 = smul.u32 %s33, 8
        %s292 = ssub.s32 %s291, 8
        %p293 = scmp.gt.s32.totalorder %s292, 0
        %s294 = scalar_select %p293, %s292, 0
        %p295 = scmp.lt.s32.totalorder %s294, 8
        %s296 = scalar_select %p295, %s294, 8
        %s297 = scalar_lea.vmem %s256, %s291 [#allocation7]
        %v298 = vld [vmem:[%s297] sm:$0xff]
        %s299 = scalar_lea.vmem %s256, %s296 [#allocation7]
        %v300 = vld [vmem:[%s299] sm:$0xff]
        %v301 = vld [vmem:[%s299 + $0x8] sm:$0xff]
        %v302 = vld [vmem:[%s299 + $0x10] sm:$0xff]
        %v303 = vld [vmem:[#allocation10] sm:$0xff]
        %v304 = vld [vmem:[#allocation10 + $0x8] sm:$0xff]
        %v305 = vld [vmem:[#allocation10 + $0x10] sm:$0xff]
        %v306 = vld [vmem:[#allocation10 + $0x18] sm:$0xff]
        %v307 = vld [vmem:[%s3] sm:$0x1]
        %v309 = vlaneseq
        %v310 = vshrl.u32 %v309, 7
        %v311 = vsub.s32 0, %v310
        %v312 = vrot.slane %v307, %v311
        %vm314 = vcmask 261120
        %v316 = vsel %vm314, %v298, 0
        %318 = vmatprep.subr.mxu0 0.0
        %319 = vmatpush1.msra.mxu0 0.0
        %320 = vmatprep.subr.mxu0 0.0
        %321 = vmatpush1.msra.mxu0 0.0
        %322 = vmatprep.subr.mxu0 0.0
        %323 = vmatpush1.msra.mxu0 0.0
        %324 = vmatprep.subr.mxu0 0.0
        %325 = vmatpush1.msra.mxu0 0.0
        %326 = vmatprep.subr.mxu0 0.0
        %327 = vmatpush1.msra.mxu0 0.0
        %328 = vmatprep.subr.mxu0 0.0
        %329 = vmatpush1.msra.mxu0 0.0
        %330 = vmatprep.subr.mxu0 0.0
        %331 = vmatpush1.msra.mxu0 0.0
        %332 = vmatprep.subr.mxu0 0.0
        %333 = vmatpush1.msra.mxu0 0.0
        %334 = vmatprep.subr.mxu0 0.0
        %335 = vmatpush1.msra.mxu0 0.0
        %336 = vmatprep.subr.mxu0 0.0
        %337 = vmatpush1.msra.mxu0 0.0
        %338 = vmatprep.subr.mxu0 0.0
        %339 = vmatpush1.msra.mxu0 0.0
        %340 = vmatprep.subr.mxu0 0.0
        %341 = vmatpush1.msra.mxu0 0.0
        %342 = vmatprep.subr.mxu0 0.0
        %343 = vmatpush1.msra.mxu0 %v306
        %344 = vmatprep.subr.mxu0 0.0
        %345 = vmatpush1.msra.mxu0 %v305
        %346 = vmatprep.subr.mxu0 0.0
        %347 = vmatpush1.msra.mxu0 %v304
        %348 = vmatprep.subr.mxu0 0.0
        %349 = vmatpush1.msra.mxu0 %v303
        %350 = vmatprep.subr.mxu0 0.0
        %351 = vmatpush2.msra.mxu0 0.0
        %352 = vmatprep.subr.mxu0 0.0
        %353 = vmatpush2.msra.mxu0 0.0
        %354 = vmatprep.subr.mxu0 0.0
        %355 = vmatpush2.msra.mxu0 0.0
        %356 = vmatprep.subr.mxu0 0.0
        %357 = vmatpush2.msra.mxu0 0.0
        %358 = vmatprep.subr.mxu0 0.0
        %359 = vmatpush2.msra.mxu0 0.0
        %360 = vmatprep.subr.mxu0 0.0
        %361 = vmatpush2.msra.mxu0 0.0
        %362 = vmatprep.subr.mxu0 0.0
        %363 = vmatpush2.msra.mxu0 0.0
        %364 = vmatprep.subr.mxu0 0.0
        %365 = vmatpush2.msra.mxu0 0.0
        %366 = vmatprep.subr.mxu0 0.0
        %367 = vmatpush2.msra.mxu0 0.0
        %368 = vmatprep.subr.mxu0 0.0
        %369 = vmatpush2.msra.mxu0 0.0
        %370 = vmatprep.subr.mxu0 0.0
        %371 = vmatpush2.msra.mxu0 0.0
        %372 = vmatprep.subr.mxu0 0.0
        %373 = vmatpush2.msra.mxu0 0.0
        %374 = vmatprep.subr.mxu0 0.0
        %375 = vmatpush2.msra.mxu0 0.0
        %376 = vmatprep.subr.mxu0 0.0
        %377 = vmatpush2.msra.mxu0 0.0
        %378 = vmatprep.subr.mxu0 0.0
        %379 = vmatpush2.msra.mxu0 0.0
        %380 = vmatprep.subr.mxu0 0.0
        %381 = vmatpush2.msra.mxu0 0.0
        %382 = vmatprep.mubr.f32.mxu0 0.0
        %383 = vmatmul.mubr.f32.gmra.mxu0 %v316
        %v384 = vpop.f32.mrf.mxu0
        %v385 = vadd.f32 %v312, %v384
        %v386 = vpop.f32.mrf.mxu0
        %387 = vdwg.mxu0
        %388 = vst.msk [vmem:[#allocation2] sm:$0xff] %vm314, %v385
        %v389 = vld [vmem:[#allocation12] sm:$0xff]
        %v390 = vld [vmem:[#allocation12 + $0x8] sm:$0xff]
        %v391 = vld [vmem:[#allocation12 + $0x10] sm:$0xff]
        %v392 = vld [vmem:[#allocation12 + $0x18] sm:$0xff]
        %v393 = vld [vmem:[%s5] sm:$0x1]
        %v395 = vlaneseq
        %v396 = vshrl.u32 %v395, 7
        %v397 = vsub.s32 0, %v396
        %v398 = vrot.slane %v393, %v397
        %v401 = vsel %vm314, %v300, 0
        %v404 = vsel %vm314, %v301, 0
        %v407 = vsel %vm314, %v302, 0
        %409 = vmatprep.subr.mxu0 0.0
        %410 = vmatpush1.msra.mxu0 0.0
        %411 = vmatprep.subr.mxu0 0.0
        %412 = vmatpush1.msra.mxu0 0.0
        %413 = vmatprep.subr.mxu0 0.0
        %414 = vmatpush1.msra.mxu0 0.0
        %415 = vmatprep.subr.mxu0 0.0
        %416 = vmatpush1.msra.mxu0 0.0
        %417 = vmatprep.subr.mxu0 0.0
        %418 = vmatpush1.msra.mxu0 0.0
        %419 = vmatprep.subr.mxu0 0.0
        %420 = vmatpush1.msra.mxu0 0.0
        %421 = vmatprep.subr.mxu0 0.0
        %422 = vmatpush1.msra.mxu0 0.0
        %423 = vmatprep.subr.mxu0 0.0
        %424 = vmatpush1.msra.mxu0 0.0
        %425 = vmatprep.subr.mxu0 0.0
        %426 = vmatpush1.msra.mxu0 0.0
        %427 = vmatprep.subr.mxu0 0.0
        %428 = vmatpush1.msra.mxu0 0.0
        %429 = vmatprep.subr.mxu0 0.0
        %430 = vmatpush1.msra.mxu0 0.0
        %431 = vmatprep.subr.mxu0 0.0
        %432 = vmatpush1.msra.mxu0 0.0
        %433 = vmatprep.subr.mxu0 0.0
        %434 = vmatpush1.msra.mxu0 %v392
        %435 = vmatprep.subr.mxu0 0.0
        %436 = vmatpush1.msra.mxu0 %v391
        %437 = vmatprep.subr.mxu0 0.0
        %438 = vmatpush1.msra.mxu0 %v390
        %439 = vmatprep.subr.mxu0 0.0
        %440 = vmatpush1.msra.mxu0 %v389
        %441 = vmatprep.subr.mxu0 0.0
        %442 = vmatpush2.msra.mxu0 0.0
        %443 = vmatprep.subr.mxu0 0.0
        %444 = vmatpush2.msra.mxu0 0.0
        %445 = vmatprep.subr.mxu0 0.0
        %446 = vmatpush2.msra.mxu0 0.0
        %447 = vmatprep.subr.mxu0 0.0
        %448 = vmatpush2.msra.mxu0 0.0
        %449 = vmatprep.subr.mxu0 0.0
        %450 = vmatpush2.msra.mxu0 0.0
        %451 = vmatprep.subr.mxu0 0.0
        %452 = vmatpush2.msra.mxu0 0.0
        %453 = vmatprep.subr.mxu0 0.0
        %454 = vmatpush2.msra.mxu0 0.0
        %455 = vmatprep.subr.mxu0 0.0
        %456 = vmatpush2.msra.mxu0 0.0
        %457 = vmatprep.subr.mxu0 0.0
        %458 = vmatpush2.msra.mxu0 0.0
        %459 = vmatprep.subr.mxu0 0.0
        %460 = vmatpush2.msra.mxu0 0.0
        %461 = vmatprep.subr.mxu0 0.0
        %462 = vmatpush2.msra.mxu0 0.0
        %463 = vmatprep.subr.mxu0 0.0
        %464 = vmatpush2.msra.mxu0 0.0
        %465 = vmatprep.subr.mxu0 0.0
        %466 = vmatpush2.msra.mxu0 0.0
        %467 = vmatprep.subr.mxu0 0.0
        %468 = vmatpush2.msra.mxu0 0.0
        %469 = vmatprep.subr.mxu0 0.0
        %470 = vmatpush2.msra.mxu0 0.0
        %471 = vmatprep.subr.mxu0 0.0
        %472 = vmatpush2.msra.mxu0 0.0
        %473 = vmatprep.mubr.f32.mxu0 0.0
        %474 = vmatmul.mubr.f32.gmra.mxu0 %v401
        %v475 = vpop.f32.mrf.mxu0
        %v476 = vadd.f32 %v398, %v475
        %v477 = vpop.f32.mrf.mxu0
        %478 = vmatprep.mubr.f32.mxu0 0.0
        %479 = vmatmul.mubr.f32.gmra.mxu0 %v404
        %v480 = vpop.f32.mrf.mxu0
        %v481 = vadd.f32 %v398, %v480
        %v482 = vpop.f32.mrf.mxu0
        %483 = vmatprep.mubr.f32.mxu0 0.0
        %484 = vmatmul.mubr.f32.gmra.mxu0 %v407
        %v485 = vpop.f32.mrf.mxu0
        %v486 = vadd.f32 %v398, %v485
        %v487 = vpop.f32.mrf.mxu0
        %488 = vdwg.mxu0
        %vm489 = vcmask 523264
        %490 = vst.msk [vmem:[#allocation3] sm:$0xff] %vm489, %v476
        %491 = vst.msk [vmem:[#allocation3 + $0x8] sm:$0xff] %vm489, %v481
        %492 = vst.msk [vmem:[#allocation3 + $0x10] sm:$0xff] %vm489, %v486
        %s493 = sld [smem:[#allocation6 + %s32]]
        %v494 = vlaneseq
        %v495 = vshrl.u32 %v494, 7
        %v496 = vstv %s291
        %v497 = vadd.s32 %v495, %v496
        %v498 = vlaneseq
        %v499 = vand.u32 %v498, 127
        %v500 = vstv %s296
        %v501 = vadd.s32 %v499, %v500
        %v502 = vsub.s32 %v497, 4
        %vm503 = vcmp.ge.s32.totalorder %v501, %v502
        %v504 = vadd.s32 %v497, 2
        %vm505 = vcmp.le.s32.totalorder %v501, %v504
        %vm506 = vmand %vm503, %vm505
        %v507 = vstv %s493
        %vm508 = vcmp.lt.s32.totalorder %v501, %v507
        %vm509 = vmand %vm506, %vm508
        %v510 = vld [vmem:[#allocation2] sm:$0xff]
        %v511 = vld [vmem:[#allocation3] sm:$0xff]
        %v512 = vld [vmem:[#allocation3 + $0x8] sm:$0xff]
        %v513 = vld [vmem:[#allocation3 + $0x10] sm:$0xff]
        %vm514 = vcmask 64512
        %v516 = vsel %vm514, %v510, 0
        %v519 = vsel %vm514, %v511, 0
        %v522 = vsel %vm514, %v512, 0
        %v525 = vsel %vm514, %v513, 0
        %527 = vmatprep.subr.mxu0 0.0
        %528 = vmatpush1.xpose.msra.mxu0 0.0
        %529 = vmatprep.subr.mxu0 0.0
        %530 = vmatpush1.xpose.msra.mxu0 0.0
        %531 = vmatprep.subr.mxu0 0.0
        %532 = vmatpush1.xpose.msra.mxu0 0.0
        %533 = vmatprep.subr.mxu0 0.0
        %534 = vmatpush1.xpose.msra.mxu0 0.0
        %535 = vmatprep.subr.mxu0 0.0
        %536 = vmatpush1.xpose.msra.mxu0 0.0
        %537 = vmatprep.subr.mxu0 0.0
        %538 = vmatpush1.xpose.msra.mxu0 0.0
        %539 = vmatprep.subr.mxu0 0.0
        %540 = vmatpush1.xpose.msra.mxu0 0.0
        %541 = vmatprep.subr.mxu0 0.0
        %542 = vmatpush1.xpose.msra.mxu0 0.0
        %543 = vmatprep.subr.mxu0 0.0
        %544 = vmatpush1.xpose.msra.mxu0 0.0
        %545 = vmatprep.subr.mxu0 0.0
        %546 = vmatpush1.xpose.msra.mxu0 0.0
        %547 = vmatprep.subr.mxu0 0.0
        %548 = vmatpush1.xpose.msra.mxu0 0.0
        %549 = vmatprep.subr.mxu0 0.0
        %550 = vmatpush1.xpose.msra.mxu0 0.0
        %551 = vmatprep.subr.mxu0 0.0
        %552 = vmatpush1.xpose.msra.mxu0 0.0
        %553 = vmatprep.subr.mxu0 0.0
        %554 = vmatpush1.xpose.msra.mxu0 %v525
        %555 = vmatprep.subr.mxu0 0.0
        %556 = vmatpush1.xpose.msra.mxu0 %v522
        %557 = vmatprep.subr.mxu0 0.0
        %558 = vmatpush1.xpose.msra.mxu0 %v519
        %559 = vmatprep.subr.mxu0 0.0
        %560 = vmatpush2.xpose.msra.mxu0 0.0
        %561 = vmatprep.subr.mxu0 0.0
        %562 = vmatpush2.xpose.msra.mxu0 0.0
        %563 = vmatprep.subr.mxu0 0.0
        %564 = vmatpush2.xpose.msra.mxu0 0.0
        %565 = vmatprep.subr.mxu0 0.0
        %566 = vmatpush2.xpose.msra.mxu0 0.0
        %567 = vmatprep.subr.mxu0 0.0
        %568 = vmatpush2.xpose.msra.mxu0 0.0
        %569 = vmatprep.subr.mxu0 0.0
        %570 = vmatpush2.xpose.msra.mxu0 0.0
        %571 = vmatprep.subr.mxu0 0.0
        %572 = vmatpush2.xpose.msra.mxu0 0.0
        %573 = vmatprep.subr.mxu0 0.0
        %574 = vmatpush2.xpose.msra.mxu0 0.0
        %575 = vmatprep.subr.mxu0 0.0
        %576 = vmatpush2.xpose.msra.mxu0 0.0
        %577 = vmatprep.subr.mxu0 0.0
        %578 = vmatpush2.xpose.msra.mxu0 0.0
        %579 = vmatprep.subr.mxu0 0.0
        %580 = vmatpush2.xpose.msra.mxu0 0.0
        %581 = vmatprep.subr.mxu0 0.0
        %582 = vmatpush2.xpose.msra.mxu0 0.0
        %583 = vmatprep.subr.mxu0 0.0
        %584 = vmatpush2.xpose.msra.mxu0 0.0
        %585 = vmatprep.subr.mxu0 0.0
        %586 = vmatpush2.xpose.msra.mxu0 0.0
        %587 = vmatprep.subr.mxu0 0.0
        %588 = vmatpush2.xpose.msra.mxu0 0.0
        %589 = vmatprep.subr.mxu0 0.0
        %590 = vmatpush2.xpose.msra.mxu0 0.0
        %591 = vmatprep.mubr.f32.mxu0 0.0
        %592 = vmatmul.mubr.f32.gmra.mxu0 %v516
        %v593 = vpop.f32.mrf.mxu0
        %v594 = vadd.f32 0.0, %v593
        %v595 = vpop.f32.mrf.mxu0
        %596 = vdwg.mxu0
        %v597 = vsel %vm509, %v594, -3.125e+13
        %vm598 = vcmask 195584
        %v599 = vsel %vm598, %v597, -inf
        %600 = vmax.xlane.f32.xlu0 %v599
        %v601 = vpop.xlane.xlu0 %600
        %v602 = vsub.f32 %v597, %v601
        %v603 = vmul.f32 %v602, 1.442695
        %v604 = vpow.pop %v603
        %v605 = vsel %vm598, %v604, 0.0
        %606 = vadd.xlane.f32.xlu0 %v605
        %v607 = vpop.xlane.xlu0 %606
        %v608 = vrcp.pop %v607
        %609 = vrot.lane.b32.xlu0 %v511, 96
        %v610 = vpop.permute.xlu0 %609
        %611 = vrot.lane.b32.xlu0 %v512, 96
        %v612 = vpop.permute.xlu0 %611
        %613 = vrot.lane.b32.xlu0 %v513, 96
        %v614 = vpop.permute.xlu0 %613
        %v619 = vsel %vm598, %v604, 0
        %621 = vmatprep.subr.mxu0 0.0
        %622 = vmatpush1.msra.mxu0 0.0
        %623 = vmatprep.subr.mxu0 0.0
        %624 = vmatpush1.msra.mxu0 0.0
        %625 = vmatprep.subr.mxu0 0.0
        %626 = vmatpush1.msra.mxu0 0.0
        %627 = vmatprep.subr.mxu0 0.0
        %628 = vmatpush1.msra.mxu0 0.0
        %629 = vmatprep.subr.mxu0 0.0
        %630 = vmatpush1.msra.mxu0 0.0
        %631 = vmatprep.subr.mxu0 0.0
        %632 = vmatpush1.msra.mxu0 0.0
        %633 = vmatprep.subr.mxu0 0.0
        %634 = vmatpush1.msra.mxu0 0.0
        %635 = vmatprep.subr.mxu0 0.0
        %636 = vmatpush1.msra.mxu0 0.0
        %637 = vmatprep.subr.mxu0 0.0
        %638 = vmatpush1.msra.mxu0 0.0
        %639 = vmatprep.subr.mxu0 0.0
        %640 = vmatpush1.msra.mxu0 0.0
        %641 = vmatprep.subr.mxu0 0.0
        %642 = vmatpush1.msra.mxu0 0.0
        %643 = vmatprep.subr.mxu0 0.0
        %644 = vmatpush1.msra.mxu0 0.0
        %645 = vmatprep.subr.mxu0 0.0
        %646 = vmatpush1.msra.mxu0 0.0
        %647 = vmatprep.subr.mxu0 0.0
        %648 = vmatpush1.msra.mxu0 %v614
        %649 = vmatprep.subr.mxu0 0.0
        %650 = vmatpush1.msra.mxu0 %v612
        %651 = vmatprep.subr.mxu0 0.0
        %652 = vmatpush1.msra.mxu0 %v610
        %653 = vmatprep.subr.mxu0 0.0
        %654 = vmatpush2.msra.mxu0 0.0
        %655 = vmatprep.subr.mxu0 0.0
        %656 = vmatpush2.msra.mxu0 0.0
        %657 = vmatprep.subr.mxu0 0.0
        %658 = vmatpush2.msra.mxu0 0.0
        %659 = vmatprep.subr.mxu0 0.0
        %660 = vmatpush2.msra.mxu0 0.0
        %661 = vmatprep.subr.mxu0 0.0
        %662 = vmatpush2.msra.mxu0 0.0
        %663 = vmatprep.subr.mxu0 0.0
        %664 = vmatpush2.msra.mxu0 0.0
        %665 = vmatprep.subr.mxu0 0.0
        %666 = vmatpush2.msra.mxu0 0.0
        %667 = vmatprep.subr.mxu0 0.0
        %668 = vmatpush2.msra.mxu0 0.0
        %669 = vmatprep.subr.mxu0 0.0
        %670 = vmatpush2.msra.mxu0 0.0
        %671 = vmatprep.subr.mxu0 0.0
        %672 = vmatpush2.msra.mxu0 0.0
        %673 = vmatprep.subr.mxu0 0.0
        %674 = vmatpush2.msra.mxu0 0.0
        %675 = vmatprep.subr.mxu0 0.0
        %676 = vmatpush2.msra.mxu0 0.0
        %677 = vmatprep.subr.mxu0 0.0
        %678 = vmatpush2.msra.mxu0 0.0
        %679 = vmatprep.subr.mxu0 0.0
        %680 = vmatpush2.msra.mxu0 0.0
        %681 = vmatprep.subr.mxu0 0.0
        %682 = vmatpush2.msra.mxu0 0.0
        %683 = vmatprep.subr.mxu0 0.0
        %684 = vmatpush2.msra.mxu0 0.0
        %685 = vmatprep.mubr.f32.mxu0 0.0
        %686 = vmatmul.mubr.f32.gmra.mxu0 %v619
        %v687 = vpop.f32.mrf.mxu0
        %v688 = vadd.f32 0.0, %v687
        %v689 = vpop.f32.mrf.mxu0
        %690 = vdwg.mxu0
        %v691 = vmul.f32 %v688, %v608
        %692 = vst.msk [vmem:[#allocation4] sm:$0xff] %vm514, %v691
        %v693 = vld [vmem:[#allocation2] sm:$0xff]
        %v694 = vld [vmem:[#allocation3] sm:$0xff]
        %v695 = vld [vmem:[#allocation3 + $0x8] sm:$0xff]
        %v696 = vld [vmem:[#allocation3 + $0x10] sm:$0xff]
        %698 = vrot.lane.b32.xlu0 %v693, 120
        %v699 = vpop.permute.xlu0 %698
        %703 = vrot.lane.b32.xlu0 %v694, 120
        %v704 = vpop.permute.xlu0 %703
        %705 = vrot.lane.b32.xlu0 %v695, 120
        %v706 = vpop.permute.xlu0 %705
        %707 = vrot.lane.b32.xlu0 %v696, 120
        %v708 = vpop.permute.xlu0 %707
        %v709 = vsel %vm514, %v699, 0
        %v711 = vsel %vm514, %v704, 0
        %v713 = vsel %vm514, %v706, 0
        %v715 = vsel %vm514, %v708, 0
        %717 = vmatprep.subr.mxu0 0.0
        %718 = vmatpush1.xpose.msra.mxu0 0.0
        %719 = vmatprep.subr.mxu0 0.0
        %720 = vmatpush1.xpose.msra.mxu0 0.0
        %721 = vmatprep.subr.mxu0 0.0
        %722 = vmatpush1.xpose.msra.mxu0 0.0
        %723 = vmatprep.subr.mxu0 0.0
        %724 = vmatpush1.xpose.msra.mxu0 0.0
        %725 = vmatprep.subr.mxu0 0.0
        %726 = vmatpush1.xpose.msra.mxu0 0.0
        %727 = vmatprep.subr.mxu0 0.0
        %728 = vmatpush1.xpose.msra.mxu0 0.0
        %729 = vmatprep.subr.mxu0 0.0
        %730 = vmatpush1.xpose.msra.mxu0 0.0
        %731 = vmatprep.subr.mxu0 0.0
        %732 = vmatpush1.xpose.msra.mxu0 0.0
        %733 = vmatprep.subr.mxu0 0.0
        %734 = vmatpush1.xpose.msra.mxu0 0.0
        %735 = vmatprep.subr.mxu0 0.0
        %736 = vmatpush1.xpose.msra.mxu0 0.0
        %737 = vmatprep.subr.mxu0 0.0
        %738 = vmatpush1.xpose.msra.mxu0 0.0
        %739 = vmatprep.subr.mxu0 0.0
        %740 = vmatpush1.xpose.msra.mxu0 0.0
        %741 = vmatprep.subr.mxu0 0.0
        %742 = vmatpush1.xpose.msra.mxu0 0.0
        %743 = vmatprep.subr.mxu0 0.0
        %744 = vmatpush1.xpose.msra.mxu0 %v715
        %745 = vmatprep.subr.mxu0 0.0
        %746 = vmatpush1.xpose.msra.mxu0 %v713
        %747 = vmatprep.subr.mxu0 0.0
        %748 = vmatpush1.xpose.msra.mxu0 %v711
        %749 = vmatprep.subr.mxu0 0.0
        %750 = vmatpush2.xpose.msra.mxu0 0.0
        %751 = vmatprep.subr.mxu0 0.0
        %752 = vmatpush2.xpose.msra.mxu0 0.0
        %753 = vmatprep.subr.mxu0 0.0
        %754 = vmatpush2.xpose.msra.mxu0 0.0
        %755 = vmatprep.subr.mxu0 0.0
        %756 = vmatpush2.xpose.msra.mxu0 0.0
        %757 = vmatprep.subr.mxu0 0.0
        %758 = vmatpush2.xpose.msra.mxu0 0.0
        %759 = vmatprep.subr.mxu0 0.0
        %760 = vmatpush2.xpose.msra.mxu0 0.0
        %761 = vmatprep.subr.mxu0 0.0
        %762 = vmatpush2.xpose.msra.mxu0 0.0
        %763 = vmatprep.subr.mxu0 0.0
        %764 = vmatpush2.xpose.msra.mxu0 0.0
        %765 = vmatprep.subr.mxu0 0.0
        %766 = vmatpush2.xpose.msra.mxu0 0.0
        %767 = vmatprep.subr.mxu0 0.0
        %768 = vmatpush2.xpose.msra.mxu0 0.0
        %769 = vmatprep.subr.mxu0 0.0
        %770 = vmatpush2.xpose.msra.mxu0 0.0
        %771 = vmatprep.subr.mxu0 0.0
        %772 = vmatpush2.xpose.msra.mxu0 0.0
        %773 = vmatprep.subr.mxu0 0.0
        %774 = vmatpush2.xpose.msra.mxu0 0.0
        %775 = vmatprep.subr.mxu0 0.0
        %776 = vmatpush2.xpose.msra.mxu0 0.0
        %777 = vmatprep.subr.mxu0 0.0
        %778 = vmatpush2.xpose.msra.mxu0 0.0
        %779 = vmatprep.subr.mxu0 0.0
        %780 = vmatpush2.xpose.msra.mxu0 0.0
        %781 = vmatprep.mubr.f32.mxu0 0.0
        %782 = vmatmul.mubr.f32.gmra.mxu0 %v709
        %v783 = vpop.f32.mrf.mxu0
        %v784 = vadd.f32 0.0, %v783
        %v785 = vpop.f32.mrf.mxu0
        %786 = vdwg.mxu0
        %v787 = vsel %vm509, %v784, -3.125e+13
        %v788 = vsel %vm598, %v787, -inf
        %789 = vmax.xlane.f32.xlu0 %v788
        %v790 = vpop.xlane.xlu0 %789
        %v791 = vsub.f32 %v787, %v790
        %v792 = vmul.f32 %v791, 1.442695
        %v793 = vpow.pop %v792
        %v794 = vsel %vm598, %v793, 0.0
        %795 = vadd.xlane.f32.xlu0 %v794
        %v796 = vpop.xlane.xlu0 %795
        %v797 = vrcp.pop %v796
        %798 = vrot.lane.b32.xlu0 %v694, 88
        %v799 = vpop.permute.xlu0 %798
        %800 = vrot.lane.b32.xlu0 %v695, 88
        %v801 = vpop.permute.xlu0 %800
        %802 = vrot.lane.b32.xlu0 %v696, 88
        %v803 = vpop.permute.xlu0 %802
        %v808 = vsel %vm598, %v793, 0
        %810 = vmatprep.subr.mxu0 0.0
        %811 = vmatpush1.msra.mxu0 0.0
        %812 = vmatprep.subr.mxu0 0.0
        %813 = vmatpush1.msra.mxu0 0.0
        %814 = vmatprep.subr.mxu0 0.0
        %815 = vmatpush1.msra.mxu0 0.0
        %816 = vmatprep.subr.mxu0 0.0
        %817 = vmatpush1.msra.mxu0 0.0
        %818 = vmatprep.subr.mxu0 0.0
        %819 = vmatpush1.msra.mxu0 0.0
        %820 = vmatprep.subr.mxu0 0.0
        %821 = vmatpush1.msra.mxu0 0.0
        %822 = vmatprep.subr.mxu0 0.0
        %823 = vmatpush1.msra.mxu0 0.0
        %824 = vmatprep.subr.mxu0 0.0
        %825 = vmatpush1.msra.mxu0 0.0
        %826 = vmatprep.subr.mxu0 0.0
        %827 = vmatpush1.msra.mxu0 0.0
        %828 = vmatprep.subr.mxu0 0.0
        %829 = vmatpush1.msra.mxu0 0.0
        %830 = vmatprep.subr.mxu0 0.0
        %831 = vmatpush1.msra.mxu0 0.0
        %832 = vmatprep.subr.mxu0 0.0
        %833 = vmatpush1.msra.mxu0 0.0
        %834 = vmatprep.subr.mxu0 0.0
        %835 = vmatpush1.msra.mxu0 0.0
        %836 = vmatprep.subr.mxu0 0.0
        %837 = vmatpush1.msra.mxu0 %v803
        %838 = vmatprep.subr.mxu0 0.0
        %839 = vmatpush1.msra.mxu0 %v801
        %840 = vmatprep.subr.mxu0 0.0
        %841 = vmatpush1.msra.mxu0 %v799
        %842 = vmatprep.subr.mxu0 0.0
        %843 = vmatpush2.msra.mxu0 0.0
        %844 = vmatprep.subr.mxu0 0.0
        %845 = vmatpush2.msra.mxu0 0.0
        %846 = vmatprep.subr.mxu0 0.0
        %847 = vmatpush2.msra.mxu0 0.0
        %848 = vmatprep.subr.mxu0 0.0
        %849 = vmatpush2.msra.mxu0 0.0
        %850 = vmatprep.subr.mxu0 0.0
        %851 = vmatpush2.msra.mxu0 0.0
        %852 = vmatprep.subr.mxu0 0.0
        %853 = vmatpush2.msra.mxu0 0.0
        %854 = vmatprep.subr.mxu0 0.0
        %855 = vmatpush2.msra.mxu0 0.0
        %856 = vmatprep.subr.mxu0 0.0
        %857 = vmatpush2.msra.mxu0 0.0
        %858 = vmatprep.subr.mxu0 0.0
        %859 = vmatpush2.msra.mxu0 0.0
        %860 = vmatprep.subr.mxu0 0.0
        %861 = vmatpush2.msra.mxu0 0.0
        %862 = vmatprep.subr.mxu0 0.0
        %863 = vmatpush2.msra.mxu0 0.0
        %864 = vmatprep.subr.mxu0 0.0
        %865 = vmatpush2.msra.mxu0 0.0
        %866 = vmatprep.subr.mxu0 0.0
        %867 = vmatpush2.msra.mxu0 0.0
        %868 = vmatprep.subr.mxu0 0.0
        %869 = vmatpush2.msra.mxu0 0.0
        %870 = vmatprep.subr.mxu0 0.0
        %871 = vmatpush2.msra.mxu0 0.0
        %872 = vmatprep.subr.mxu0 0.0
        %873 = vmatpush2.msra.mxu0 0.0
        %874 = vmatprep.mubr.f32.mxu0 0.0
        %875 = vmatmul.mubr.f32.gmra.mxu0 %v808
        %v876 = vpop.f32.mrf.mxu0
        %v877 = vadd.f32 0.0, %v876
        %v878 = vpop.f32.mrf.mxu0
        %879 = vdwg.mxu0
        %v880 = vmul.f32 %v877, %v797
        %882 = vrot.lane.b32.xlu0 %v880, 8
        %v883 = vpop.permute.xlu0 %882
        %vm885 = vcmask 130112
        %886 = vst.msk [vmem:[#allocation4] sm:$0xff] %vm885, %v883
        %v887 = vld [vmem:[#allocation2] sm:$0xff]
        %v888 = vld [vmem:[#allocation3] sm:$0xff]
        %v889 = vld [vmem:[#allocation3 + $0x8] sm:$0xff]
        %v890 = vld [vmem:[#allocation3 + $0x10] sm:$0xff]
        %892 = vrot.lane.b32.xlu0 %v887, 112
        %v893 = vpop.permute.xlu0 %892
        %897 = vrot.lane.b32.xlu0 %v888, 112
        %v898 = vpop.permute.xlu0 %897
        %899 = vrot.lane.b32.xlu0 %v889, 112
        %v900 = vpop.permute.xlu0 %899
        %901 = vrot.lane.b32.xlu0 %v890, 112
        %v902 = vpop.permute.xlu0 %901
        %v903 = vsel %vm514, %v893, 0
        %v905 = vsel %vm514, %v898, 0
        %v907 = vsel %vm514, %v900, 0
        %v909 = vsel %vm514, %v902, 0
        %911 = vmatprep.subr.mxu0 0.0
        %912 = vmatpush1.xpose.msra.mxu0 0.0
        %913 = vmatprep.subr.mxu0 0.0
        %914 = vmatpush1.xpose.msra.mxu0 0.0
        %915 = vmatprep.subr.mxu0 0.0
        %916 = vmatpush1.xpose.msra.mxu0 0.0
        %917 = vmatprep.subr.mxu0 0.0
        %918 = vmatpush1.xpose.msra.mxu0 0.0
        %919 = vmatprep.subr.mxu0 0.0
        %920 = vmatpush1.xpose.msra.mxu0 0.0
        %921 = vmatprep.subr.mxu0 0.0
        %922 = vmatpush1.xpose.msra.mxu0 0.0
        %923 = vmatprep.subr.mxu0 0.0
        %924 = vmatpush1.xpose.msra.mxu0 0.0
        %925 = vmatprep.subr.mxu0 0.0
        %926 = vmatpush1.xpose.msra.mxu0 0.0
        %927 = vmatprep.subr.mxu0 0.0
        %928 = vmatpush1.xpose.msra.mxu0 0.0
        %929 = vmatprep.subr.mxu0 0.0
        %930 = vmatpush1.xpose.msra.mxu0 0.0
        %931 = vmatprep.subr.mxu0 0.0
        %932 = vmatpush1.xpose.msra.mxu0 0.0
        %933 = vmatprep.subr.mxu0 0.0
        %934 = vmatpush1.xpose.msra.mxu0 0.0
        %935 = vmatprep.subr.mxu0 0.0
        %936 = vmatpush1.xpose.msra.mxu0 0.0
        %937 = vmatprep.subr.mxu0 0.0
        %938 = vmatpush1.xpose.msra.mxu0 %v909
        %939 = vmatprep.subr.mxu0 0.0
        %940 = vmatpush1.xpose.msra.mxu0 %v907
        %941 = vmatprep.subr.mxu0 0.0
        %942 = vmatpush1.xpose.msra.mxu0 %v905
        %943 = vmatprep.subr.mxu0 0.0
        %944 = vmatpush2.xpose.msra.mxu0 0.0
        %945 = vmatprep.subr.mxu0 0.0
        %946 = vmatpush2.xpose.msra.mxu0 0.0
        %947 = vmatprep.subr.mxu0 0.0
        %948 = vmatpush2.xpose.msra.mxu0 0.0
        %949 = vmatprep.subr.mxu0 0.0
        %950 = vmatpush2.xpose.msra.mxu0 0.0
        %951 = vmatprep.subr.mxu0 0.0
        %952 = vmatpush2.xpose.msra.mxu0 0.0
        %953 = vmatprep.subr.mxu0 0.0
        %954 = vmatpush2.xpose.msra.mxu0 0.0
        %955 = vmatprep.subr.mxu0 0.0
        %956 = vmatpush2.xpose.msra.mxu0 0.0
        %957 = vmatprep.subr.mxu0 0.0
        %958 = vmatpush2.xpose.msra.mxu0 0.0
        %959 = vmatprep.subr.mxu0 0.0
        %960 = vmatpush2.xpose.msra.mxu0 0.0
        %961 = vmatprep.subr.mxu0 0.0
        %962 = vmatpush2.xpose.msra.mxu0 0.0
        %963 = vmatprep.subr.mxu0 0.0
        %964 = vmatpush2.xpose.msra.mxu0 0.0
        %965 = vmatprep.subr.mxu0 0.0
        %966 = vmatpush2.xpose.msra.mxu0 0.0
        %967 = vmatprep.subr.mxu0 0.0
        %968 = vmatpush2.xpose.msra.mxu0 0.0
        %969 = vmatprep.subr.mxu0 0.0
        %970 = vmatpush2.xpose.msra.mxu0 0.0
        %971 = vmatprep.subr.mxu0 0.0
        %972 = vmatpush2.xpose.msra.mxu0 0.0
        %973 = vmatprep.subr.mxu0 0.0
        %974 = vmatpush2.xpose.msra.mxu0 0.0
        %975 = vmatprep.mubr.f32.mxu0 0.0
        %976 = vmatmul.mubr.f32.gmra.mxu0 %v903
        %v977 = vpop.f32.mrf.mxu0
        %v978 = vadd.f32 0.0, %v977
        %v979 = vpop.f32.mrf.mxu0
        %980 = vdwg.mxu0
        %v981 = vsel %vm509, %v978, -3.125e+13
        %v982 = vsel %vm598, %v981, -inf
        %983 = vmax.xlane.f32.xlu0 %v982
        %v984 = vpop.xlane.xlu0 %983
        %v985 = vsub.f32 %v981, %v984
        %v986 = vmul.f32 %v985, 1.442695
        %v987 = vpow.pop %v986
        %v988 = vsel %vm598, %v987, 0.0
        %989 = vadd.xlane.f32.xlu0 %v988
        %v990 = vpop.xlane.xlu0 %989
        %v991 = vrcp.pop %v990
        %992 = vrot.lane.b32.xlu0 %v888, 80
        %v993 = vpop.permute.xlu0 %992
        %994 = vrot.lane.b32.xlu0 %v889, 80
        %v995 = vpop.permute.xlu0 %994
        %996 = vrot.lane.b32.xlu0 %v890, 80
        %v997 = vpop.permute.xlu0 %996
        %v1002 = vsel %vm598, %v987, 0
        %1004 = vmatprep.subr.mxu0 0.0
        %1005 = vmatpush1.msra.mxu0 0.0
        %1006 = vmatprep.subr.mxu0 0.0
        %1007 = vmatpush1.msra.mxu0 0.0
        %1008 = vmatprep.subr.mxu0 0.0
        %1009 = vmatpush1.msra.mxu0 0.0
        %1010 = vmatprep.subr.mxu0 0.0
        %1011 = vmatpush1.msra.mxu0 0.0
        %1012 = vmatprep.subr.mxu0 0.0
        %1013 = vmatpush1.msra.mxu0 0.0
        %1014 = vmatprep.subr.mxu0 0.0
        %1015 = vmatpush1.msra.mxu0 0.0
        %1016 = vmatprep.subr.mxu0 0.0
        %1017 = vmatpush1.msra.mxu0 0.0
        %1018 = vmatprep.subr.mxu0 0.0
        %1019 = vmatpush1.msra.mxu0 0.0
        %1020 = vmatprep.subr.mxu0 0.0
        %1021 = vmatpush1.msra.mxu0 0.0
        %1022 = vmatprep.subr.mxu0 0.0
        %1023 = vmatpush1.msra.mxu0 0.0
        %1024 = vmatprep.subr.mxu0 0.0
        %1025 = vmatpush1.msra.mxu0 0.0
        %1026 = vmatprep.subr.mxu0 0.0
        %1027 = vmatpush1.msra.mxu0 0.0
        %1028 = vmatprep.subr.mxu0 0.0
        %1029 = vmatpush1.msra.mxu0 0.0
        %1030 = vmatprep.subr.mxu0 0.0
        %1031 = vmatpush1.msra.mxu0 %v997
        %1032 = vmatprep.subr.mxu0 0.0
        %1033 = vmatpush1.msra.mxu0 %v995
        %1034 = vmatprep.subr.mxu0 0.0
        %1035 = vmatpush1.msra.mxu0 %v993
        %1036 = vmatprep.subr.mxu0 0.0
        %1037 = vmatpush2.msra.mxu0 0.0
        %1038 = vmatprep.subr.mxu0 0.0
        %1039 = vmatpush2.msra.mxu0 0.0
        %1040 = vmatprep.subr.mxu0 0.0
        %1041 = vmatpush2.msra.mxu0 0.0
        %1042 = vmatprep.subr.mxu0 0.0
        %1043 = vmatpush2.msra.mxu0 0.0
        %1044 = vmatprep.subr.mxu0 0.0
        %1045 = vmatpush2.msra.mxu0 0.0
        %1046 = vmatprep.subr.mxu0 0.0
        %1047 = vmatpush2.msra.mxu0 0.0
        %1048 = vmatprep.subr.mxu0 0.0
        %1049 = vmatpush2.msra.mxu0 0.0
        %1050 = vmatprep.subr.mxu0 0.0
        %1051 = vmatpush2.msra.mxu0 0.0
        %1052 = vmatprep.subr.mxu0 0.0
        %1053 = vmatpush2.msra.mxu0 0.0
        %1054 = vmatprep.subr.mxu0 0.0
        %1055 = vmatpush2.msra.mxu0 0.0
        %1056 = vmatprep.subr.mxu0 0.0
        %1057 = vmatpush2.msra.mxu0 0.0
        %1058 = vmatprep.subr.mxu0 0.0
        %1059 = vmatpush2.msra.mxu0 0.0
        %1060 = vmatprep.subr.mxu0 0.0
        %1061 = vmatpush2.msra.mxu0 0.0
        %1062 = vmatprep.subr.mxu0 0.0
        %1063 = vmatpush2.msra.mxu0 0.0
        %1064 = vmatprep.subr.mxu0 0.0
        %1065 = vmatpush2.msra.mxu0 0.0
        %1066 = vmatprep.subr.mxu0 0.0
        %1067 = vmatpush2.msra.mxu0 0.0
        %1068 = vmatprep.mubr.f32.mxu0 0.0
        %1069 = vmatmul.mubr.f32.gmra.mxu0 %v1002
        %v1070 = vpop.f32.mrf.mxu0
        %v1071 = vadd.f32 0.0, %v1070
        %v1072 = vpop.f32.mrf.mxu0
        %1073 = vdwg.mxu0
        %v1074 = vmul.f32 %v1071, %v991
        %1076 = vrot.lane.b32.xlu0 %v1074, 16
        %v1077 = vpop.permute.xlu0 %1076
        %vm1079 = vcmask 195712
        %1080 = vst.msk [vmem:[#allocation4] sm:$0xff] %vm1079, %v1077
        %v1081 = vld [vmem:[#allocation2] sm:$0xff]
        %v1082 = vld [vmem:[#allocation3] sm:$0xff]
        %v1083 = vld [vmem:[#allocation3 + $0x8] sm:$0xff]
        %v1084 = vld [vmem:[#allocation3 + $0x10] sm:$0xff]
        %1086 = vrot.lane.b32.xlu0 %v1081, 104
        %v1087 = vpop.permute.xlu0 %1086
        %1091 = vrot.lane.b32.xlu0 %v1082, 104
        %v1092 = vpop.permute.xlu0 %1091
        %1093 = vrot.lane.b32.xlu0 %v1083, 104
        %v1094 = vpop.permute.xlu0 %1093
        %1095 = vrot.lane.b32.xlu0 %v1084, 104
        %v1096 = vpop.permute.xlu0 %1095
        %v1097 = vsel %vm514, %v1087, 0
        %v1099 = vsel %vm514, %v1092, 0
        %v1101 = vsel %vm514, %v1094, 0
        %v1103 = vsel %vm514, %v1096, 0
        %1105 = vmatprep.subr.mxu0 0.0
        %1106 = vmatpush1.xpose.msra.mxu0 0.0
        %1107 = vmatprep.subr.mxu0 0.0
        %1108 = vmatpush1.xpose.msra.mxu0 0.0
        %1109 = vmatprep.subr.mxu0 0.0
        %1110 = vmatpush1.xpose.msra.mxu0 0.0
        %1111 = vmatprep.subr.mxu0 0.0
        %1112 = vmatpush1.xpose.msra.mxu0 0.0
        %1113 = vmatprep.subr.mxu0 0.0
        %1114 = vmatpush1.xpose.msra.mxu0 0.0
        %1115 = vmatprep.subr.mxu0 0.0
        %1116 = vmatpush1.xpose.msra.mxu0 0.0
        %1117 = vmatprep.subr.mxu0 0.0
        %1118 = vmatpush1.xpose.msra.mxu0 0.0
        %1119 = vmatprep.subr.mxu0 0.0
        %1120 = vmatpush1.xpose.msra.mxu0 0.0
        %1121 = vmatprep.subr.mxu0 0.0
        %1122 = vmatpush1.xpose.msra.mxu0 0.0
        %1123 = vmatprep.subr.mxu0 0.0
        %1124 = vmatpush1.xpose.msra.mxu0 0.0
        %1125 = vmatprep.subr.mxu0 0.0
        %1126 = vmatpush1.xpose.msra.mxu0 0.0
        %1127 = vmatprep.subr.mxu0 0.0
        %1128 = vmatpush1.xpose.msra.mxu0 0.0
        %1129 = vmatprep.subr.mxu0 0.0
        %1130 = vmatpush1.xpose.msra.mxu0 0.0
        %1131 = vmatprep.subr.mxu0 0.0
        %1132 = vmatpush1.xpose.msra.mxu0 %v1103
        %1133 = vmatprep.subr.mxu0 0.0
        %1134 = vmatpush1.xpose.msra.mxu0 %v1101
        %1135 = vmatprep.subr.mxu0 0.0
        %1136 = vmatpush1.xpose.msra.mxu0 %v1099
        %1137 = vmatprep.subr.mxu0 0.0
        %1138 = vmatpush2.xpose.msra.mxu0 0.0
        %1139 = vmatprep.subr.mxu0 0.0
        %1140 = vmatpush2.xpose.msra.mxu0 0.0
        %1141 = vmatprep.subr.mxu0 0.0
        %1142 = vmatpush2.xpose.msra.mxu0 0.0
        %1143 = vmatprep.subr.mxu0 0.0
        %1144 = vmatpush2.xpose.msra.mxu0 0.0
        %1145 = vmatprep.subr.mxu0 0.0
        %1146 = vmatpush2.xpose.msra.mxu0 0.0
        %1147 = vmatprep.subr.mxu0 0.0
        %1148 = vmatpush2.xpose.msra.mxu0 0.0
        %1149 = vmatprep.subr.mxu0 0.0
        %1150 = vmatpush2.xpose.msra.mxu0 0.0
        %1151 = vmatprep.subr.mxu0 0.0
        %1152 = vmatpush2.xpose.msra.mxu0 0.0
        %1153 = vmatprep.subr.mxu0 0.0
        %1154 = vmatpush2.xpose.msra.mxu0 0.0
        %1155 = vmatprep.subr.mxu0 0.0
        %1156 = vmatpush2.xpose.msra.mxu0 0.0
        %1157 = vmatprep.subr.mxu0 0.0
        %1158 = vmatpush2.xpose.msra.mxu0 0.0
        %1159 = vmatprep.subr.mxu0 0.0
        %1160 = vmatpush2.xpose.msra.mxu0 0.0
        %1161 = vmatprep.subr.mxu0 0.0
        %1162 = vmatpush2.xpose.msra.mxu0 0.0
        %1163 = vmatprep.subr.mxu0 0.0
        %1164 = vmatpush2.xpose.msra.mxu0 0.0
        %1165 = vmatprep.subr.mxu0 0.0
        %1166 = vmatpush2.xpose.msra.mxu0 0.0
        %1167 = vmatprep.subr.mxu0 0.0
        %1168 = vmatpush2.xpose.msra.mxu0 0.0
        %1169 = vmatprep.mubr.f32.mxu0 0.0
        %1170 = vmatmul.mubr.f32.gmra.mxu0 %v1097
        %v1171 = vpop.f32.mrf.mxu0
        %v1172 = vadd.f32 0.0, %v1171
        %v1173 = vpop.f32.mrf.mxu0
        %1174 = vdwg.mxu0
        %v1175 = vsel %vm509, %v1172, -3.125e+13
        %v1176 = vsel %vm598, %v1175, -inf
        %1177 = vmax.xlane.f32.xlu0 %v1176
        %v1178 = vpop.xlane.xlu0 %1177
        %v1179 = vsub.f32 %v1175, %v1178
        %v1180 = vmul.f32 %v1179, 1.442695
        %v1181 = vpow.pop %v1180
        %v1182 = vsel %vm598, %v1181, 0.0
        %1183 = vadd.xlane.f32.xlu0 %v1182
        %v1184 = vpop.xlane.xlu0 %1183
        %v1185 = vrcp.pop %v1184
        %1186 = vrot.lane.b32.xlu0 %v1082, 72
        %v1187 = vpop.permute.xlu0 %1186
        %1188 = vrot.lane.b32.xlu0 %v1083, 72
        %v1189 = vpop.permute.xlu0 %1188
        %1190 = vrot.lane.b32.xlu0 %v1084, 72
        %v1191 = vpop.permute.xlu0 %1190
        %v1196 = vsel %vm598, %v1181, 0
        %1198 = vmatprep.subr.mxu0 0.0
        %1199 = vmatpush1.msra.mxu0 0.0
        %1200 = vmatprep.subr.mxu0 0.0
        %1201 = vmatpush1.msra.mxu0 0.0
        %1202 = vmatprep.subr.mxu0 0.0
        %1203 = vmatpush1.msra.mxu0 0.0
        %1204 = vmatprep.subr.mxu0 0.0
        %1205 = vmatpush1.msra.mxu0 0.0
        %1206 = vmatprep.subr.mxu0 0.0
        %1207 = vmatpush1.msra.mxu0 0.0
        %1208 = vmatprep.subr.mxu0 0.0
        %1209 = vmatpush1.msra.mxu0 0.0
        %1210 = vmatprep.subr.mxu0 0.0
        %1211 = vmatpush1.msra.mxu0 0.0
        %1212 = vmatprep.subr.mxu0 0.0
        %1213 = vmatpush1.msra.mxu0 0.0
        %1214 = vmatprep.subr.mxu0 0.0
        %1215 = vmatpush1.msra.mxu0 0.0
        %1216 = vmatprep.subr.mxu0 0.0
        %1217 = vmatpush1.msra.mxu0 0.0
        %1218 = vmatprep.subr.mxu0 0.0
        %1219 = vmatpush1.msra.mxu0 0.0
        %1220 = vmatprep.subr.mxu0 0.0
        %1221 = vmatpush1.msra.mxu0 0.0
        %1222 = vmatprep.subr.mxu0 0.0
        %1223 = vmatpush1.msra.mxu0 0.0
        %1224 = vmatprep.subr.mxu0 0.0
        %1225 = vmatpush1.msra.mxu0 %v1191
        %1226 = vmatprep.subr.mxu0 0.0
        %1227 = vmatpush1.msra.mxu0 %v1189
        %1228 = vmatprep.subr.mxu0 0.0
        %1229 = vmatpush1.msra.mxu0 %v1187
        %1230 = vmatprep.subr.mxu0 0.0
        %1231 = vmatpush2.msra.mxu0 0.0
        %1232 = vmatprep.subr.mxu0 0.0
        %1233 = vmatpush2.msra.mxu0 0.0
        %1234 = vmatprep.subr.mxu0 0.0
        %1235 = vmatpush2.msra.mxu0 0.0
        %1236 = vmatprep.subr.mxu0 0.0
        %1237 = vmatpush2.msra.mxu0 0.0
        %1238 = vmatprep.subr.mxu0 0.0
        %1239 = vmatpush2.msra.mxu0 0.0
        %1240 = vmatprep.subr.mxu0 0.0
        %1241 = vmatpush2.msra.mxu0 0.0
        %1242 = vmatprep.subr.mxu0 0.0
        %1243 = vmatpush2.msra.mxu0 0.0
        %1244 = vmatprep.subr.mxu0 0.0
        %1245 = vmatpush2.msra.mxu0 0.0
        %1246 = vmatprep.subr.mxu0 0.0
        %1247 = vmatpush2.msra.mxu0 0.0
        %1248 = vmatprep.subr.mxu0 0.0
        %1249 = vmatpush2.msra.mxu0 0.0
        %1250 = vmatprep.subr.mxu0 0.0
        %1251 = vmatpush2.msra.mxu0 0.0
        %1252 = vmatprep.subr.mxu0 0.0
        %1253 = vmatpush2.msra.mxu0 0.0
        %1254 = vmatprep.subr.mxu0 0.0
        %1255 = vmatpush2.msra.mxu0 0.0
        %1256 = vmatprep.subr.mxu0 0.0
        %1257 = vmatpush2.msra.mxu0 0.0
        %1258 = vmatprep.subr.mxu0 0.0
        %1259 = vmatpush2.msra.mxu0 0.0
        %1260 = vmatprep.subr.mxu0 0.0
        %1261 = vmatpush2.msra.mxu0 0.0
        %1262 = vmatprep.mubr.f32.mxu0 0.0
        %1263 = vmatmul.mubr.f32.gmra.mxu0 %v1196
        %v1264 = vpop.f32.mrf.mxu0
        %v1265 = vadd.f32 0.0, %v1264
        %v1266 = vpop.f32.mrf.mxu0
        %1267 = vdwg.mxu0
        %v1268 = vmul.f32 %v1265, %v1185
        %1270 = vrot.lane.b32.xlu0 %v1268, 24
        %v1271 = vpop.permute.xlu0 %1270
        %vm1273 = vcmask 261312
        %1274 = vst.msk [vmem:[#allocation4] sm:$0xff] %vm1273, %v1271
        %v1275 = vld [vmem:[#allocation4] sm:$0xff]
        %1276 = vst.msk [vmem:[%s290] sm:$0xff] %vm314, %v1275
        %s1277 = sand.u32 %s160, 1
        %s1278 = scalar_lea.sflag [#allocation9], %s1277
        %s1279 = sand.u32 %s160, 1
        %s1280 = smul.addr %s1279, 8
        %s1281 = scalar_lea.vmem [#allocation13], %s1280
        // Predicated region
        $region53: #{tpu_custom_call.1} parent=39 // pred_check
          %p1282 = pneg %p170
        $region54: #{tpu_custom_call.1} parent=39 // pred_check_branch
          %1284 = sbr.rel (%p1282) target = $region56
        $region55: #{tpu_custom_call.1} parent=39 // pred_region
          %s1286 = ssub.s32 128, 128
          %1287 = vsyncadd %s1278, %s1286
          %s1288 = smul.addr %s32, 4
          %s1289 = sadd.s32 %s33, %s1288
          %s1290 = smul.addr %s1289, 128
          %s1291 = scalar_lea.hbm %s6, %s1290
          %s1293 = sshll.u32 %s1281, 4
          %s1294 = int_to_ptr.vmem [resolvable:$true] %s1293
          %1296 = dma.vmem_to_hbm [thread:$0]  %s1294, 128, %s1291, %s1278
        $region56: #{tpu_custom_call.1} parent=39 // pred_fallthru
          _
      $region40: #{tpu_custom_call.1} parent=5 // pred_fallthru
        _
      %p1297 = scmp.le.s32.totalorder 2, %s23
      // Predicated region
      $region57: #{tpu_custom_call.1} parent=5 // pred_check
        %p1298 = pneg %p1297
      $region58: #{tpu_custom_call.1} parent=5 // pred_check_branch
        %1300 = sbr.rel (%p1298) target = $region60
      $region59: #{tpu_custom_call.1} parent=5 // pred_region
        %s1301 = ssub.s32 %s23, 2
        // Predicated region
        $region61: #{tpu_custom_call.1} parent=59 // pred_check
          %p1302 = pneg %p176
        $region62: #{tpu_custom_call.1} parent=59 // pred_check_branch
          %1304 = sbr.rel (%p1302) target = $region64
        $region63: #{tpu_custom_call.1} parent=59 // pred_region
          %s1305 = sand.u32 %s161, 1
          %s1306 = scalar_lea.sflag [#allocation9], %s1305
          %s1307 = sand.u32 %s161, 1
          %s1308 = smul.addr %s1307, 8
          %s1309 = scalar_lea.vmem [#allocation13], %s1308
          %1310 = dma.done %s1306, 128
        $region64: #{tpu_custom_call.1} parent=59 // pred_fallthru
          _
      $region60: #{tpu_custom_call.1} parent=5 // pred_fallthru
        _
    $region6: #{tpu_custom_call.1} parent=1 // loop_footer
      %s27 = sadd.s32 1, %s23
    $region7: #{tpu_custom_call.1} parent=1 // loop_footer_branch
      %22 = sbr.rel target = $region3
    $region8: #{tpu_custom_call.1} parent=1 // loop_exit
      _
    %1311 = vsyncpa [#allocation8], 1
    %s1312 = scalar_lea.sflag [#allocation8], 1
    %1313 = vsyncpa %s1312, 1
    %1314 = vsyncpa [#allocation11], 1
    %1315 = vsyncpa [#allocation9], 1
    %s1316 = scalar_lea.sflag [#allocation9], 1
    %1317 = vsyncpa %s1316, 1

</llo_original>
